<compile_context>
chip_gen: v7x
topology: tpu7x:2x2x1
jax: 0.10.0
libtpu: 0.0.40
codegen_flags: <defaults>
</compile_context>

<pallas_src>
import jax
import jax.numpy as jnp
from jax.experimental import pallas as pl
from jax.experimental.pallas import tpu as pltpu


# --------------------------------------------------------------------------- #
# Kernel
# --------------------------------------------------------------------------- #
def gsmua_kernel(
    e1_ref, e2_ref,            # [TB, E] streamed activations (bf16 by default)
    wa_ref, wb_ref, b1_ref,    # folded attention+Linear(2E->H): [E,H], [E,H], [1,H]
    w2_ref, b2_ref,            # Linear(H -> H/2): [H, H/2], [1, H/2]
    w3_ref, b3_ref,            # Linear(H/2 -> 64): [H/2, 64], [1, 64]
    w4_ref, b4_ref,            # Linear(64 -> 1): [1, 64] row, [1, 1]
    out_ref,                   # [TB, 1] similarity scores
):
    # (seq-len-1 cross-attention + Linear(2E->H)) folded host-side (exact algebra):
    #   h = emb2 @ Wa + emb1 @ Wb + b_fold
    h = (jnp.dot(e2_ref[...], wa_ref[...], preferred_element_type=jnp.float32)
         + jnp.dot(e1_ref[...], wb_ref[...], preferred_element_type=jnp.float32)
         + b1_ref[...])
    h = jnp.maximum(h, 0.0)                                          # (TB, H) f32

    # Linear(H -> H/2) + ReLU   (dropout is identity in eval mode)
    h = jnp.dot(h, w2_ref[...], preferred_element_type=jnp.float32) + b2_ref[...]
    h = jnp.maximum(h, 0.0)                                          # (TB, H/2)

    # Linear(H/2 -> 64) + ReLU
    h = jnp.dot(h, w3_ref[...], preferred_element_type=jnp.float32) + b3_ref[...]
    h = jnp.maximum(h, 0.0)                                          # (TB, 64)

    # Linear(64 -> 1) + Sigmoid as VPU multiply + lane reduce (avoids an N=1
    # MXU matmul).  Output bytes are negligible vs. the input stream.
    logits = jnp.sum(h * w4_ref[...], axis=-1, keepdims=True) + b4_ref[...]
    out_ref[...] = jax.nn.sigmoid(logits)


# --------------------------------------------------------------------------- #
# Wrapper
# --------------------------------------------------------------------------- #
def _round_up(x, m):
    return (x + m - 1) // m * m


def _choose_batch_tile(B, E, itemsize, batch_tile):
    """Batch tile (multiple of 128 rows): big enough to amortize the ~0.35us
    per-grid-step overhead, capped for v5e scoped VMEM, and >= 2 grid steps
    whenever possible so v7x megacore gets work on both TensorCores."""
    n128 = _round_up(max(B, 1), 128) // 128
    # Double-buffered streamed input (two embeddings) capped at ~8 MiB.
    bytes_per_128_rows = 128 * 2 * E * itemsize * 2
    cap = max(1, (8 << 20) // bytes_per_128_rows)
    t = max(1, min(batch_tile // 128, n128, cap))
    if n128 >= 2 and pl.cdiv(n128, t) < 2:
        t = pl.cdiv(n128, 2)
    return t * 128


def gsmua_forward(emb1, emb2, folded_params, *, batch_tile=2048):
    """Similarity scores [B] for the GSMUA matcher (eval-mode forward)."""
    B, E = emb1.shape
    wa, wb, b1, w2, b2, w3, b3, w4t, b4 = folded_params

    # Stream activations in the weights' dtype (bf16 by default).  If the
    # caller already supplies bf16 embeddings this cast is a no-op; otherwise
    # XLA performs (and ideally fuses upstream) a cheap cast pass.
    act_dtype = wa.dtype
    e1 = emb1.astype(act_dtype)
    e2 = emb2.astype(act_dtype)

    TB = _choose_batch_tile(B, E, jnp.dtype(act_dtype).itemsize, batch_tile)
    B_pad = _round_up(B, TB)
    if B_pad != B:
        e1 = jnp.pad(e1, ((0, B_pad - B), (0, 0)))
        e2 = jnp.pad(e2, ((0, B_pad - B), (0, 0)))

    def wspec(arr):  # small full-array weight block, resident across the grid
        return pl.BlockSpec(arr.shape, lambda i: (0,) * arr.ndim)

    out = pl.pallas_call(
        gsmua_kernel,
        out_shape=jax.ShapeDtypeStruct((B_pad, 1), jnp.float32),
        grid=(B_pad // TB,),
        in_specs=[
            pl.BlockSpec((TB, E), lambda i: (i, 0)),                 # emb1 tile
            pl.BlockSpec((TB, E), lambda i: (i, 0)),                 # emb2 tile
            wspec(wa), wspec(wb), wspec(b1),
            wspec(w2), wspec(b2),
            wspec(w3), wspec(b3),
            wspec(w4t), wspec(b4),
        ],
        out_specs=pl.BlockSpec((TB, 1), lambda i: (i, 0)),
        # Batch tiles are independent -> "parallel" lets v7x shard grid steps
        # across its two TensorCores (no-op on v5e/v6e).  VMEM: <= 8 MiB of
        # double-buffered inputs + <4 MiB intermediates + <0.5 MiB weights,
        # within every chip's scoped-VMEM default (16/32/32 MiB).
        compiler_params=pltpu.CompilerParams(dimension_semantics=("parallel",)),
    )(e1, e2, wa, wb, b1, w2, b2, w3, b3, w4t, b4)

    return out[:B, 0]                                                # [B] scores


# --------------------------------------------------------------------------- #
# Parameters (module-style) and host-side folding
# --------------------------------------------------------------------------- #
def init_params(key, embedding_dim, hidden_dim):
    """Module-style parameters; weights stored as [in_features, out_features]."""
    E, H = embedding_dim, hidden_dim
    ks = jax.random.split(key, 12)
    scale = 0.05
    w = lambda k, shape: scale * jax.random.normal(k, shape, dtype=jnp.float32)
    return dict(
        wv=w(ks[0], (E, E)), bv=w(ks[1], (1, E)),          # attention V projection
        wo=w(ks[2], (E, E)), bo=w(ks[3], (1, E)),          # attention out_proj
        w1=w(ks[4], (2 * E, H)), b1=w(ks[5], (1, H)),      # Linear(2E -> H)
        w2=w(ks[6], (H, H // 2)), b2=w(ks[7], (1, H // 2)),
        w3=w(ks[8], (H // 2, 64)), b3=w(ks[9], (1, 64)),
        w4=w(ks[10], (64, 1)), b4=w(ks[11], (1, 1)),
    )


def fold_params(p, *, activation_dtype=jnp.bfloat16):
    """Fold seq-len-1 attention + Linear(2E->H) into two (E,H) weights (exact algebra).

    attn(q, kv, kv) with seq length 1 == out_proj(v_proj(kv)) == kv @ (wv@wo) + (bv@wo+bo),
    and it feeds Linear(2E->H) with no nonlinearity in between, so
        relu(cat(f(emb2), f(emb1)) @ w1 + b1) == relu(emb2 @ Wa + emb1 @ Wb + b_fold).
    Wa/Wb are stored in the streamed activation dtype (bf16) for the MXU front matmul.
    """
    hp = jax.lax.Precision.HIGHEST
    E = p["wv"].shape[0]
    m = jnp.dot(p["wv"], p["wo"], precision=hp)                      # (E, E)
    c = jnp.dot(p["bv"], p["wo"], precision=hp) + p["bo"]            # (1, E)
    w1a, w1b = p["w1"][:E], p["w1"][E:]
    wa = jnp.dot(m, w1a, precision=hp).astype(activation_dtype)      # (E, H), multiplies emb2
    wb = jnp.dot(m, w1b, precision=hp).astype(activation_dtype)      # (E, H), multiplies emb1
    b1 = jnp.dot(c, w1a + w1b, precision=hp) + p["b1"]               # (1, H), f32
    return (wa, wb, b1, p["w2"], p["b2"], p["w3"], p["b3"], p["w4"].T, p["b4"])


# --------------------------------------------------------------------------- #
# Pure-JAX references
# --------------------------------------------------------------------------- #
def reference_folded(emb1, emb2, folded_params):
    """Mirror of the kernel's exact op sequence (same folded params & dtypes)."""
    wa, wb, b1, w2, b2, w3, b3, w4t, b4 = folded_params
    e1 = emb1.astype(wa.dtype)
    e2 = emb2.astype(wa.dtype)
    h = (jnp.dot(e2, wa, preferred_element_type=jnp.float32)
         + jnp.dot(e1, wb, preferred_element_type=jnp.float32) + b1)
    h = jnp.maximum(h, 0.0)
    h = jnp.maximum(jnp.dot(h, w2, preferred_element_type=jnp.float32) + b2, 0.0)
    h = jnp.maximum(jnp.dot(h, w3, preferred_element_type=jnp.float32) + b3, 0.0)
    logits = jnp.sum(h * w4t, axis=-1) + b4[0, 0]
    return jax.nn.sigmoid(logits)


def reference_original(emb1, emb2, p):
    """Un-fused module math in f32 (seq-len-1 attention collapse, eval-mode dropout)."""
    hp = jax.lax.Precision.HIGHEST
    a1 = jnp.dot(jnp.dot(emb2, p["wv"], precision=hp) + p["bv"], p["wo"], precision=hp) + p["bo"]
    a2 = jnp.dot(jnp.dot(emb1, p["wv"], precision=hp) + p["bv"], p["wo"], precision=hp) + p["bo"]
    h = jnp.concatenate([a1, a2], axis=1)
    h = jnp.maximum(jnp.dot(h, p["w1"], precision=hp) + p["b1"], 0.0)
    h = jnp.maximum(jnp.dot(h, p["w2"], precision=hp) + p["b2"], 0.0)
    h = jnp.maximum(jnp.dot(h, p["w3"], precision=hp) + p["b3"], 0.0)
    return jax.nn.sigmoid(jnp.dot(h, p["w4"], precision=hp) + p["b4"])[:, 0]


# --------------------------------------------------------------------------- #
# Demo / correctness check
# --------------------------------------------------------------------------- #
if __name__ == "__main__":
    # Small shapes consistent with the module (embedding_dim % num_heads == 0).
    # B=300 exercises batch padding and a multi-step ("parallel") grid.
    B = 300
    embedding_dim = 128   # config['fusion_output_dim']
    hidden_dim = 64       # config['gsmua_hidden_dim']

    key = jax.random.PRNGKey(0)
    k1, k2, kp = jax.random.split(key, 3)
    emb1 = jax.random.normal(k1, (B, embedding_dim), dtype=jnp.float32)
    emb2 = jax.random.normal(k2, (B, embedding_dim), dtype=jnp.float32)

    params = init_params(kp, embedding_dim, hidden_dim)
    folded = fold_params(params)

    scores = jax.block_until_ready(gsmua_forward(emb1, emb2, folded))
    assert scores.shape == (B,)

    # 1) Kernel vs. an exact pure-JAX mirror of its op sequence (tight bound).
    ref_f = reference_folded(emb1, emb2, folded)
    assert jnp.allclose(scores, ref_f, atol=1e-4, rtol=1e-4), \
        float(jnp.max(jnp.abs(scores - ref_f)))

    # 2) Kernel vs. the original (un-fused) f32 module math: the fold is exact
    #    algebra but bf16 streaming + MXU rounding order loosen the bound.
    ref_o = reference_original(emb1, emb2, params)
    assert jnp.allclose(scores, ref_o, atol=2e-2, rtol=0.0), \
        float(jnp.max(jnp.abs(scores - ref_o)))

    print("KERNEL_OK")
</pallas_src>

<mosaic_0001>
module attributes {stable_mosaic.version = 11 : i64} {
  func.func @gsmua_kernel(%arg0: i32, %arg1: memref<256x128xbf16, #tpu.memory_space<vmem>>, %arg2: memref<256x128xbf16, #tpu.memory_space<vmem>>, %arg3: memref<128x64xbf16, #tpu.memory_space<vmem>>, %arg4: memref<128x64xbf16, #tpu.memory_space<vmem>>, %arg5: memref<1x64xf32, #tpu.memory_space<vmem>>, %arg6: memref<64x32xf32, #tpu.memory_space<vmem>>, %arg7: memref<1x32xf32, #tpu.memory_space<vmem>>, %arg8: memref<32x64xf32, #tpu.memory_space<vmem>>, %arg9: memref<1x64xf32, #tpu.memory_space<vmem>>, %arg10: memref<1x64xf32, #tpu.memory_space<vmem>>, %arg11: memref<1x1xf32, #tpu.memory_space<vmem>>, %arg12: memref<256x1xf32, #tpu.memory_space<vmem>>) attributes {dimension_semantics = [#tpu.dimension_semantics<parallel>], iteration_bounds = array<i64: 2>, scalar_prefetch = 0 : i64, scratch_operands = 0 : i64, tpu.core_type = #tpu.core_type<tc>, window_params = [{transform_indices = @transform_0, window_bounds = array<i64: 256, 128>}, {transform_indices = @transform_1, window_bounds = array<i64: 256, 128>}, {pipeline_mode = #tpu.pipeline_mode<synchronous>, transform_indices = @transform_2, window_bounds = array<i64: 128, 64>}, {pipeline_mode = #tpu.pipeline_mode<synchronous>, transform_indices = @transform_3, window_bounds = array<i64: 128, 64>}, {pipeline_mode = #tpu.pipeline_mode<synchronous>, transform_indices = @transform_4, window_bounds = array<i64: 1, 64>}, {pipeline_mode = #tpu.pipeline_mode<synchronous>, transform_indices = @transform_5, window_bounds = array<i64: 64, 32>}, {pipeline_mode = #tpu.pipeline_mode<synchronous>, transform_indices = @transform_6, window_bounds = array<i64: 1, 32>}, {pipeline_mode = #tpu.pipeline_mode<synchronous>, transform_indices = @transform_7, window_bounds = array<i64: 32, 64>}, {pipeline_mode = #tpu.pipeline_mode<synchronous>, transform_indices = @transform_8, window_bounds = array<i64: 1, 64>}, {pipeline_mode = #tpu.pipeline_mode<synchronous>, transform_indices = @transform_9, window_bounds = array<i64: 1, 64>}, {pipeline_mode = #tpu.pipeline_mode<synchronous>, transform_indices = @transform_10, window_bounds = array<i64: 1, 1>}, {transform_indices = @transform_11, window_bounds = array<i64: 256, 1>}]} {
    %c0 = arith.constant 0 : index
    %c0_0 = arith.constant 0 : index
    %0 = vector.load %arg2[%c0, %c0_0] : memref<256x128xbf16, #tpu.memory_space<vmem>>, vector<256x128xbf16>
    %c0_1 = arith.constant 0 : index
    %c0_2 = arith.constant 0 : index
    %1 = vector.load %arg3[%c0_1, %c0_2] : memref<128x64xbf16, #tpu.memory_space<vmem>>, vector<128x64xbf16>
    %cst = arith.constant dense<0.000000e+00> : vector<256x64xf32>
    %2 = tpu.matmul %0, %1, %cst {dimension_numbers = #tpu.dot_dimension_numbers<[1], [0], [0], [1], [0, 0, 1, 1], [], []>} : vector<256x128xbf16>, vector<128x64xbf16>, vector<256x64xf32> -> vector<256x64xf32>
    %c0_3 = arith.constant 0 : index
    %c0_4 = arith.constant 0 : index
    %3 = vector.load %arg1[%c0_3, %c0_4] : memref<256x128xbf16, #tpu.memory_space<vmem>>, vector<256x128xbf16>
    %c0_5 = arith.constant 0 : index
    %c0_6 = arith.constant 0 : index
    %4 = vector.load %arg4[%c0_5, %c0_6] : memref<128x64xbf16, #tpu.memory_space<vmem>>, vector<128x64xbf16>
    %cst_7 = arith.constant dense<0.000000e+00> : vector<256x64xf32>
    %5 = tpu.matmul %3, %4, %cst_7 {dimension_numbers = #tpu.dot_dimension_numbers<[1], [0], [0], [1], [0, 0, 1, 1], [], []>} : vector<256x128xbf16>, vector<128x64xbf16>, vector<256x64xf32> -> vector<256x64xf32>
    %6 = arith.addf %2, %5 : vector<256x64xf32>
    %c0_8 = arith.constant 0 : index
    %c0_9 = arith.constant 0 : index
    %7 = vector.load %arg5[%c0_8, %c0_9] : memref<1x64xf32, #tpu.memory_space<vmem>>, vector<1x64xf32>
    %8 = vector.broadcast %7 : vector<1x64xf32> to vector<256x64xf32>
    %9 = arith.addf %6, %8 : vector<256x64xf32>
    %cst_10 = arith.constant 0.000000e+00 : f32
    %10 = vector.broadcast %cst_10 : f32 to vector<256x64xf32>
    %11 = arith.maximumf %9, %10 : vector<256x64xf32>
    %c0_11 = arith.constant 0 : index
    %c0_12 = arith.constant 0 : index
    %12 = vector.load %arg6[%c0_11, %c0_12] : memref<64x32xf32, #tpu.memory_space<vmem>>, vector<64x32xf32>
    %cst_13 = arith.constant dense<0.000000e+00> : vector<256x32xf32>
    %13 = tpu.matmul %11, %12, %cst_13 {dimension_numbers = #tpu.dot_dimension_numbers<[1], [0], [0], [1], [0, 0, 1, 1], [], []>} : vector<256x64xf32>, vector<64x32xf32>, vector<256x32xf32> -> vector<256x32xf32>
    %c0_14 = arith.constant 0 : index
    %c0_15 = arith.constant 0 : index
    %14 = vector.load %arg7[%c0_14, %c0_15] : memref<1x32xf32, #tpu.memory_space<vmem>>, vector<1x32xf32>
    %15 = vector.broadcast %14 : vector<1x32xf32> to vector<256x32xf32>
    %16 = arith.addf %13, %15 : vector<256x32xf32>
    %cst_16 = arith.constant 0.000000e+00 : f32
    %17 = vector.broadcast %cst_16 : f32 to vector<256x32xf32>
    %18 = arith.maximumf %16, %17 : vector<256x32xf32>
    %c0_17 = arith.constant 0 : index
    %c0_18 = arith.constant 0 : index
    %19 = vector.load %arg8[%c0_17, %c0_18] : memref<32x64xf32, #tpu.memory_space<vmem>>, vector<32x64xf32>
    %cst_19 = arith.constant dense<0.000000e+00> : vector<256x64xf32>
    %20 = tpu.matmul %18, %19, %cst_19 {dimension_numbers = #tpu.dot_dimension_numbers<[1], [0], [0], [1], [0, 0, 1, 1], [], []>} : vector<256x32xf32>, vector<32x64xf32>, vector<256x64xf32> -> vector<256x64xf32>
    %c0_20 = arith.constant 0 : index
    %c0_21 = arith.constant 0 : index
    %21 = vector.load %arg9[%c0_20, %c0_21] : memref<1x64xf32, #tpu.memory_space<vmem>>, vector<1x64xf32>
    %22 = vector.broadcast %21 : vector<1x64xf32> to vector<256x64xf32>
    %23 = arith.addf %20, %22 : vector<256x64xf32>
    %cst_22 = arith.constant 0.000000e+00 : f32
    %24 = vector.broadcast %cst_22 : f32 to vector<256x64xf32>
    %25 = arith.maximumf %23, %24 : vector<256x64xf32>
    %c0_23 = arith.constant 0 : index
    %c0_24 = arith.constant 0 : index
    %26 = vector.load %arg10[%c0_23, %c0_24] : memref<1x64xf32, #tpu.memory_space<vmem>>, vector<1x64xf32>
    %27 = vector.broadcast %26 : vector<1x64xf32> to vector<256x64xf32>
    %28 = arith.mulf %25, %27 : vector<256x64xf32>
    %cst_25 = arith.constant dense<0.000000e+00> : vector<256xf32>
    %29 = vector.multi_reduction <add>, %28, %cst_25 [1] : vector<256x64xf32> to vector<256xf32>
    %30 = vector.shape_cast %29 : vector<256xf32> to vector<256x1xf32>
    %c0_26 = arith.constant 0 : index
    %c0_27 = arith.constant 0 : index
    %31 = vector.load %arg11[%c0_26, %c0_27] : memref<1x1xf32, #tpu.memory_space<vmem>>, vector<1x1xf32>
    %32 = vector.broadcast %31 : vector<1x1xf32> to vector<256x1xf32>
    %33 = arith.addf %30, %32 : vector<256x1xf32>
    %34 = arith.negf %33 : vector<256x1xf32>
    %35 = math.exp %34 : vector<256x1xf32>
    %cst_28 = arith.constant 1.000000e+00 : f32
    %36 = vector.broadcast %cst_28 : f32 to vector<256x1xf32>
    %37 = arith.addf %36, %35 : vector<256x1xf32>
    %38 = arith.divf %36, %37 : vector<256x1xf32>
    %c0_29 = arith.constant 0 : index
    %c0_30 = arith.constant 0 : index
    %39 = vector.load %arg12[%c0_29, %c0_30] : memref<256x1xf32, #tpu.memory_space<vmem>>, vector<256x1xf32>
    tpu.vector_store %arg12[%c0_29, %c0_30], %38 {strides = array<i32>} : memref<256x1xf32, #tpu.memory_space<vmem>>, vector<256x1xf32>,
    return
  }
  func.func @transform_0(%arg0: i32) -> (i32, i32) {
    %c0_i32 = arith.constant 0 : i32
    %c0_i32_0 = arith.constant 0 : i32
    return %arg0, %c0_i32 : i32, i32
  }
  func.func @transform_1(%arg0: i32) -> (i32, i32) {
    %c0_i32 = arith.constant 0 : i32
    %c0_i32_0 = arith.constant 0 : i32
    return %arg0, %c0_i32 : i32, i32
  }
  func.func @transform_2(%arg0: i32) -> (i32, i32) {
    %c0_i32 = arith.constant 0 : i32
    %c0_i32_0 = arith.constant 0 : i32
    %c0_i32_1 = arith.constant 0 : i32
    return %c0_i32, %c0_i32_0 : i32, i32
  }
  func.func @transform_3(%arg0: i32) -> (i32, i32) {
    %c0_i32 = arith.constant 0 : i32
    %c0_i32_0 = arith.constant 0 : i32
    %c0_i32_1 = arith.constant 0 : i32
    return %c0_i32, %c0_i32_0 : i32, i32
  }
  func.func @transform_4(%arg0: i32) -> (i32, i32) {
    %c0_i32 = arith.constant 0 : i32
    %c0_i32_0 = arith.constant 0 : i32
    %c0_i32_1 = arith.constant 0 : i32
    return %c0_i32, %c0_i32_0 : i32, i32
  }
  func.func @transform_5(%arg0: i32) -> (i32, i32) {
    %c0_i32 = arith.constant 0 : i32
    %c0_i32_0 = arith.constant 0 : i32
    %c0_i32_1 = arith.constant 0 : i32
    return %c0_i32, %c0_i32_0 : i32, i32
  }
  func.func @transform_6(%arg0: i32) -> (i32, i32) {
    %c0_i32 = arith.constant 0 : i32
    %c0_i32_0 = arith.constant 0 : i32
    %c0_i32_1 = arith.constant 0 : i32
    return %c0_i32, %c0_i32_0 : i32, i32
  }
  func.func @transform_7(%arg0: i32) -> (i32, i32) {
    %c0_i32 = arith.constant 0 : i32
    %c0_i32_0 = arith.constant 0 : i32
    %c0_i32_1 = arith.constant 0 : i32
    return %c0_i32, %c0_i32_0 : i32, i32
  }
  func.func @transform_8(%arg0: i32) -> (i32, i32) {
    %c0_i32 = arith.constant 0 : i32
    %c0_i32_0 = arith.constant 0 : i32
    %c0_i32_1 = arith.constant 0 : i32
    return %c0_i32, %c0_i32_0 : i32, i32
  }
  func.func @transform_9(%arg0: i32) -> (i32, i32) {
    %c0_i32 = arith.constant 0 : i32
    %c0_i32_0 = arith.constant 0 : i32
    %c0_i32_1 = arith.constant 0 : i32
    return %c0_i32, %c0_i32_0 : i32, i32
  }
  func.func @transform_10(%arg0: i32) -> (i32, i32) {
    %c0_i32 = arith.constant 0 : i32
    %c0_i32_0 = arith.constant 0 : i32
    %c0_i32_1 = arith.constant 0 : i32
    return %c0_i32, %c0_i32_0 : i32, i32
  }
  func.func @transform_11(%arg0: i32) -> (i32, i32) {
    %c0_i32 = arith.constant 0 : i32
    %c0_i32_0 = arith.constant 0 : i32
    return %arg0, %c0_i32 : i32, i32
  }
}

</mosaic_0001>

<llo_original>
// kernel: tpu_custom_call.1
$region0: #{tpu_custom_call.1}
  #allocation0 [shape = 'u32[]', space=smem, size = 0x4, offset = 0x4, fixed_abs, tag = 'smem constant byte address 0x4 - core index']
  #allocation1 [shape = 'u32[144,128]{1,0:T(1,128)}', space=vmem, size = 0x12000, scoped, tag = 'internal scratch']
  #allocation2 [shape = 'f32[1,1]{1,0:T(1,128)S(1)}', space=vmem, size = 0x200, scoped, tag = 'scoped memory for tpu_custom_call.1']
  %s0 = inlined_call_operand.vmem [shape: bf16[512,128], index: 0, kind: input, shape index: {}]
  %s1 = inlined_call_operand.hbm [shape: bf16[512,128], index: 1, kind: input, shape index: {}]
  %s2 = inlined_call_operand.vmem [shape: bf16[128,64], index: 2, kind: input, shape index: {}]
  %s3 = inlined_call_operand.vmem [shape: bf16[128,64], index: 3, kind: input, shape index: {}]
  %s4 = inlined_call_operand.vmem [shape: f32[1,64], index: 4, kind: input, shape index: {}]
  %s5 = inlined_call_operand.vmem [shape: f32[64,32], index: 5, kind: input, shape index: {}]
  %s6 = inlined_call_operand.vmem [shape: f32[1,32], index: 6, kind: input, shape index: {}]
  %s7 = inlined_call_operand.hbm [shape: f32[32,64], index: 7, kind: input, shape index: {}]
  %s8 = inlined_call_operand.vmem [shape: f32[1,64], index: 8, kind: input, shape index: {}]
  %s9 = inlined_call_operand.vmem [shape: f32[1,64], index: 9, kind: input, shape index: {}]
  %s10 = inlined_call_operand.<no memory space> [shape: f32[1,1], index: 10, kind: input, shape index: {}]
  %s11 = inlined_call_operand.vmem [shape: f32[512,1], index: 11, kind: output, shape index: {}]
  %s12 = sld [smem:[#allocation0]]
  $region85: #{tpu_custom_call.1} parent=0
    _
  %s14 = ssub.s32 1, %s12
  %s15 = scalar_select 0, %s14, %s12
  %v16 = vstv %s10
  %17 = vst [vmem:[#allocation2] sm:$0x1] %v16
  $region1: #{tpu_custom_call.1} parent=0
    #allocation3 [shape = 'u8[131072]{0}', space=vmem, size = 0x20000, scoped, tag = 'input window, operand 1']
    #allocation4 [shape = 's32[2]{0}', space=sflag, size = 0x8, scoped, tag = 'scoped memory for tpu_custom_call.1']
    #allocation5 [shape = 'u8[16384]{0}', space=vmem, size = 0x4000, scoped, tag = 'input window, operand 7, single buffered']
    #allocation6 [shape = 's32[1]{0}', space=sflag, size = 0x4, scoped, tag = 'scoped memory for tpu_custom_call.1']
    %18 = vsyncpa [#allocation4], 0
    %s19 = scalar_lea.sflag [#allocation4], 1
    %20 = vsyncpa %s19, 0
    %21 = vsyncpa [#allocation6], 0
    loop: start=0, step=1, limit=4
    $region2: #{tpu_custom_call.1} parent=1 // loop_pre_header
      _
    $region3: #{tpu_custom_call.1} parent=1 // loop_header
      %s23 = sphi 0, %s27
      %p24 = scmp.ge.s32.totalorder %s23, 4
      %s33 = sphi 0, %s35
      %s36 = sphi 0, %s33
      %s37 = sphi 0, %s36
      %s53 = sphi 0, %s37
      %s59 = sphi 0, %s61
      %s62 = sphi 0, %s59
      %s63 = sphi 0, %s62
      %s79 = sphi 0, %s63
      %s83 = sphi 0, %s83
      %s85 = sphi 0, %s83
      %s86 = sphi 0, %s85
      %s100 = sphi 0, %s86
      %s104 = sphi 0, %s104
      %s106 = sphi 0, %s104
      %s107 = sphi 0, %s106
      %s121 = sphi 0, %s107
      %s125 = sphi 0, %s125
      %s127 = sphi 0, %s125
      %s128 = sphi 0, %s127
      %s142 = sphi 0, %s128
      %s146 = sphi 0, %s146
      %s148 = sphi 0, %s146
      %s149 = sphi 0, %s148
      %s163 = sphi 0, %s149
      %s167 = sphi 0, %s167
      %s169 = sphi 0, %s167
      %s170 = sphi 0, %s169
      %s184 = sphi 0, %s170
      %s188 = sphi 0, %s188
      %s190 = sphi 0, %s188
      %s191 = sphi 0, %s190
      %s205 = sphi 0, %s191
      %s209 = sphi 0, %s209
      %s211 = sphi 0, %s209
      %s212 = sphi 0, %s211
      %s226 = sphi 0, %s212
      %s230 = sphi 0, %s230
      %s232 = sphi 0, %s230
      %s233 = sphi 0, %s232
      %s247 = sphi 0, %s233
      %s251 = sphi 0, %s251
      %s253 = sphi 0, %s251
      %s254 = sphi 0, %s253
      %s268 = sphi 0, %s254
      %s274 = sphi 0, %s276
      %s277 = sphi 0, %s274
      %s278 = sphi 0, %s277
      %s294 = sphi 0, %s278
    $region4: #{tpu_custom_call.1} parent=1 // loop_header_branch
      %26 = sbr.rel (%p24) target = $region8
    $region5: #{tpu_custom_call.1} parent=1 // loop_body
      %s28 = ssub.s32 %s23, 1
      %s29 = ssub.s32 %s23, 2
      %s30 = sadd.s32 %s23, 1
      %s31 = ssub.s32 %s23, %s30
      %p32 = scmp.eq.s32.totalorder %s31, 0
      %s34 = sadd.s32 %s33, 1
      %s35 = scalar_select %p32, %s33, %s34
      %p38 = pneg %p32
      %p39 = scmp.eq.s32.totalorder %s23, 1
      %p40 = por %p38, %p39
      %p41 = scmp.ne.s32.totalorder %s33, %s36
      %p42 = scmp.eq.s32.totalorder %s23, 0
      %p43 = por %p41, %p42
      %p44 = scmp.ne.s32.totalorder %s33, %s36
      %p45 = scmp.eq.s32.totalorder %s28, 1
      %p46 = por %p44, %p45
      %p47 = scmp.ne.s32.totalorder %s36, %s37
      %p48 = scmp.eq.s32.totalorder %s28, 0
      %p49 = por %p47, %p48
      %p50 = scmp.ne.s32.totalorder %s36, %s37
      %p51 = scmp.eq.s32.totalorder %s29, 1
      %p52 = por %p50, %p51
      %p54 = scmp.ne.s32.totalorder %s37, %s53
      %p55 = scmp.eq.s32.totalorder %s29, 0
      %p56 = por %p54, %p55
      %s57 = ssub.s32 %s23, %s30
      %p58 = scmp.eq.s32.totalorder %s57, 0
      %s60 = sadd.s32 %s59, 1
      %s61 = scalar_select %p58, %s59, %s60
      %p64 = pneg %p58
      %p65 = scmp.eq.s32.totalorder %s23, 1
      %p66 = por %p64, %p65
      %p67 = scmp.ne.s32.totalorder %s59, %s62
      %p68 = scmp.eq.s32.totalorder %s23, 0
      %p69 = por %p67, %p68
      %p70 = scmp.ne.s32.totalorder %s59, %s62
      %p71 = scmp.eq.s32.totalorder %s28, 1
      %p72 = por %p70, %p71
      %p73 = scmp.ne.s32.totalorder %s62, %s63
      %p74 = scmp.eq.s32.totalorder %s28, 0
      %p75 = por %p73, %p74
      %p76 = scmp.ne.s32.totalorder %s62, %s63
      %p77 = scmp.eq.s32.totalorder %s29, 1
      %p78 = por %p76, %p77
      %p80 = scmp.ne.s32.totalorder %s63, %s79
      %p81 = scmp.eq.s32.totalorder %s29, 0
      %p82 = por %p80, %p81
      %s84 = sadd.s32 %s83, 1
      %p87 = scmp.eq.s32.totalorder %s23, 1
      %p88 = scmp.ne.s32.totalorder %s83, %s85
      %p89 = scmp.eq.s32.totalorder %s23, 0
      %p90 = por %p88, %p89
      %p91 = scmp.ne.s32.totalorder %s83, %s85
      %p92 = scmp.eq.s32.totalorder %s28, 1
      %p93 = por %p91, %p92
      %p94 = scmp.ne.s32.totalorder %s85, %s86
      %p95 = scmp.eq.s32.totalorder %s28, 0
      %p96 = por %p94, %p95
      %p97 = scmp.ne.s32.totalorder %s85, %s86
      %p98 = scmp.eq.s32.totalorder %s29, 1
      %p99 = por %p97, %p98
      %p101 = scmp.ne.s32.totalorder %s86, %s100
      %p102 = scmp.eq.s32.totalorder %s29, 0
      %p103 = por %p101, %p102
      %s105 = sadd.s32 %s104, 1
      %p108 = scmp.eq.s32.totalorder %s23, 1
      %p109 = scmp.ne.s32.totalorder %s104, %s106
      %p110 = scmp.eq.s32.totalorder %s23, 0
      %p111 = por %p109, %p110
      %p112 = scmp.ne.s32.totalorder %s104, %s106
      %p113 = scmp.eq.s32.totalorder %s28, 1
      %p114 = por %p112, %p113
      %p115 = scmp.ne.s32.totalorder %s106, %s107
      %p116 = scmp.eq.s32.totalorder %s28, 0
      %p117 = por %p115, %p116
      %p118 = scmp.ne.s32.totalorder %s106, %s107
      %p119 = scmp.eq.s32.totalorder %s29, 1
      %p120 = por %p118, %p119
      %p122 = scmp.ne.s32.totalorder %s107, %s121
      %p123 = scmp.eq.s32.totalorder %s29, 0
      %p124 = por %p122, %p123
      %s126 = sadd.s32 %s125, 1
      %p129 = scmp.eq.s32.totalorder %s23, 1
      %p130 = scmp.ne.s32.totalorder %s125, %s127
      %p131 = scmp.eq.s32.totalorder %s23, 0
      %p132 = por %p130, %p131
      %p133 = scmp.ne.s32.totalorder %s125, %s127
      %p134 = scmp.eq.s32.totalorder %s28, 1
      %p135 = por %p133, %p134
      %p136 = scmp.ne.s32.totalorder %s127, %s128
      %p137 = scmp.eq.s32.totalorder %s28, 0
      %p138 = por %p136, %p137
      %p139 = scmp.ne.s32.totalorder %s127, %s128
      %p140 = scmp.eq.s32.totalorder %s29, 1
      %p141 = por %p139, %p140
      %p143 = scmp.ne.s32.totalorder %s128, %s142
      %p144 = scmp.eq.s32.totalorder %s29, 0
      %p145 = por %p143, %p144
      %s147 = sadd.s32 %s146, 1
      %p150 = scmp.eq.s32.totalorder %s23, 1
      %p151 = scmp.ne.s32.totalorder %s146, %s148
      %p152 = scmp.eq.s32.totalorder %s23, 0
      %p153 = por %p151, %p152
      %p154 = scmp.ne.s32.totalorder %s146, %s148
      %p155 = scmp.eq.s32.totalorder %s28, 1
      %p156 = por %p154, %p155
      %p157 = scmp.ne.s32.totalorder %s148, %s149
      %p158 = scmp.eq.s32.totalorder %s28, 0
      %p159 = por %p157, %p158
      %p160 = scmp.ne.s32.totalorder %s148, %s149
      %p161 = scmp.eq.s32.totalorder %s29, 1
      %p162 = por %p160, %p161
      %p164 = scmp.ne.s32.totalorder %s149, %s163
      %p165 = scmp.eq.s32.totalorder %s29, 0
      %p166 = por %p164, %p165
      %s168 = sadd.s32 %s167, 1
      %p171 = scmp.eq.s32.totalorder %s23, 1
      %p172 = scmp.ne.s32.totalorder %s167, %s169
      %p173 = scmp.eq.s32.totalorder %s23, 0
      %p174 = por %p172, %p173
      %p175 = scmp.ne.s32.totalorder %s167, %s169
      %p176 = scmp.eq.s32.totalorder %s28, 1
      %p177 = por %p175, %p176
      %p178 = scmp.ne.s32.totalorder %s169, %s170
      %p179 = scmp.eq.s32.totalorder %s28, 0
      %p180 = por %p178, %p179
      %p181 = scmp.ne.s32.totalorder %s169, %s170
      %p182 = scmp.eq.s32.totalorder %s29, 1
      %p183 = por %p181, %p182
      %p185 = scmp.ne.s32.totalorder %s170, %s184
      %p186 = scmp.eq.s32.totalorder %s29, 0
      %p187 = por %p185, %p186
      %s189 = sadd.s32 %s188, 1
      %p192 = scmp.eq.s32.totalorder %s23, 1
      %p193 = scmp.ne.s32.totalorder %s188, %s190
      %p194 = scmp.eq.s32.totalorder %s23, 0
      %p195 = por %p193, %p194
      %p196 = scmp.ne.s32.totalorder %s188, %s190
      %p197 = scmp.eq.s32.totalorder %s28, 1
      %p198 = por %p196, %p197
      %p199 = scmp.ne.s32.totalorder %s190, %s191
      %p200 = scmp.eq.s32.totalorder %s28, 0
      %p201 = por %p199, %p200
      %p202 = scmp.ne.s32.totalorder %s190, %s191
      %p203 = scmp.eq.s32.totalorder %s29, 1
      %p204 = por %p202, %p203
      %p206 = scmp.ne.s32.totalorder %s191, %s205
      %p207 = scmp.eq.s32.totalorder %s29, 0
      %p208 = por %p206, %p207
      %s210 = sadd.s32 %s209, 1
      %p213 = scmp.eq.s32.totalorder %s23, 1
      %p214 = scmp.ne.s32.totalorder %s209, %s211
      %p215 = scmp.eq.s32.totalorder %s23, 0
      %p216 = por %p214, %p215
      %p217 = scmp.ne.s32.totalorder %s209, %s211
      %p218 = scmp.eq.s32.totalorder %s28, 1
      %p219 = por %p217, %p218
      %p220 = scmp.ne.s32.totalorder %s211, %s212
      %p221 = scmp.eq.s32.totalorder %s28, 0
      %p222 = por %p220, %p221
      %p223 = scmp.ne.s32.totalorder %s211, %s212
      %p224 = scmp.eq.s32.totalorder %s29, 1
      %p225 = por %p223, %p224
      %p227 = scmp.ne.s32.totalorder %s212, %s226
      %p228 = scmp.eq.s32.totalorder %s29, 0
      %p229 = por %p227, %p228
      %s231 = sadd.s32 %s230, 1
      %p234 = scmp.eq.s32.totalorder %s23, 1
      %p235 = scmp.ne.s32.totalorder %s230, %s232
      %p236 = scmp.eq.s32.totalorder %s23, 0
      %p237 = por %p235, %p236
      %p238 = scmp.ne.s32.totalorder %s230, %s232
      %p239 = scmp.eq.s32.totalorder %s28, 1
      %p240 = por %p238, %p239
      %p241 = scmp.ne.s32.totalorder %s232, %s233
      %p242 = scmp.eq.s32.totalorder %s28, 0
      %p243 = por %p241, %p242
      %p244 = scmp.ne.s32.totalorder %s232, %s233
      %p245 = scmp.eq.s32.totalorder %s29, 1
      %p246 = por %p244, %p245
      %p248 = scmp.ne.s32.totalorder %s233, %s247
      %p249 = scmp.eq.s32.totalorder %s29, 0
      %p250 = por %p248, %p249
      %s252 = sadd.s32 %s251, 1
      %p255 = scmp.eq.s32.totalorder %s23, 1
      %p256 = scmp.ne.s32.totalorder %s251, %s253
      %p257 = scmp.eq.s32.totalorder %s23, 0
      %p258 = por %p256, %p257
      %p259 = scmp.ne.s32.totalorder %s251, %s253
      %p260 = scmp.eq.s32.totalorder %s28, 1
      %p261 = por %p259, %p260
      %p262 = scmp.ne.s32.totalorder %s253, %s254
      %p263 = scmp.eq.s32.totalorder %s28, 0
      %p264 = por %p262, %p263
      %p265 = scmp.ne.s32.totalorder %s253, %s254
      %p266 = scmp.eq.s32.totalorder %s29, 1
      %p267 = por %p265, %p266
      %p269 = scmp.ne.s32.totalorder %s254, %s268
      %p270 = scmp.eq.s32.totalorder %s29, 0
      %p271 = por %p269, %p270
      %s272 = ssub.s32 %s23, %s30
      %p273 = scmp.eq.s32.totalorder %s272, 0
      %s275 = sadd.s32 %s274, 1
      %s276 = scalar_select %p273, %s274, %s275
      %p279 = pneg %p273
      %p280 = scmp.eq.s32.totalorder %s23, 1
      %p281 = por %p279, %p280
      %p282 = scmp.ne.s32.totalorder %s274, %s277
      %p283 = scmp.eq.s32.totalorder %s23, 0
      %p284 = por %p282, %p283
      %p285 = scmp.ne.s32.totalorder %s274, %s277
      %p286 = scmp.eq.s32.totalorder %s28, 1
      %p287 = por %p285, %p286
      %p288 = scmp.ne.s32.totalorder %s277, %s278
      %p289 = scmp.eq.s32.totalorder %s28, 0
      %p290 = por %p288, %p289
      %p291 = scmp.ne.s32.totalorder %s277, %s278
      %p292 = scmp.eq.s32.totalorder %s29, 1
      %p293 = por %p291, %p292
      %p295 = scmp.ne.s32.totalorder %s278, %s294
      %p296 = scmp.eq.s32.totalorder %s29, 0
      %p297 = por %p295, %p296
      %p298 = scmp.le.s32.totalorder 1, %s23
      %p299 = scmp.lt.s32.totalorder %s23, 3
      %p300 = pnand %p298, %p299
      %p301 = pneg %p300
      // Predicated region
      $region9: #{tpu_custom_call.1} parent=5 // pred_check
        _
      $region10: #{tpu_custom_call.1} parent=5 // pred_check_branch
        %303 = sbr.rel (%p300) target = $region12
      $region11: #{tpu_custom_call.1} parent=5 // pred_region
        %s304 = ssub.s32 %s23, 1
        // Predicated region
        $region13: #{tpu_custom_call.1} parent=11 // pred_check
          %p305 = pneg %p96
        $region14: #{tpu_custom_call.1} parent=11 // pred_check_branch
          %307 = sbr.rel (%p305) target = $region16
        $region15: #{tpu_custom_call.1} parent=11 // pred_region
          _
        $region16: #{tpu_custom_call.1} parent=11 // pred_fallthru
          _
        // Predicated region
        $region17: #{tpu_custom_call.1} parent=11 // pred_check
          %p308 = pneg %p117
        $region18: #{tpu_custom_call.1} parent=11 // pred_check_branch
          %310 = sbr.rel (%p308) target = $region20
        $region19: #{tpu_custom_call.1} parent=11 // pred_region
          _
        $region20: #{tpu_custom_call.1} parent=11 // pred_fallthru
          _
        // Predicated region
        $region21: #{tpu_custom_call.1} parent=11 // pred_check
          %p311 = pneg %p138
        $region22: #{tpu_custom_call.1} parent=11 // pred_check_branch
          %313 = sbr.rel (%p311) target = $region24
        $region23: #{tpu_custom_call.1} parent=11 // pred_region
          _
        $region24: #{tpu_custom_call.1} parent=11 // pred_fallthru
          _
        // Predicated region
        $region25: #{tpu_custom_call.1} parent=11 // pred_check
          %p314 = pneg %p159
        $region26: #{tpu_custom_call.1} parent=11 // pred_check_branch
          %316 = sbr.rel (%p314) target = $region28
        $region27: #{tpu_custom_call.1} parent=11 // pred_region
          _
        $region28: #{tpu_custom_call.1} parent=11 // pred_fallthru
          _
        // Predicated region
        $region29: #{tpu_custom_call.1} parent=11 // pred_check
          %p317 = pneg %p180
        $region30: #{tpu_custom_call.1} parent=11 // pred_check_branch
          %319 = sbr.rel (%p317) target = $region32
        $region31: #{tpu_custom_call.1} parent=11 // pred_region
          _
        $region32: #{tpu_custom_call.1} parent=11 // pred_fallthru
          _
        // Predicated region
        $region33: #{tpu_custom_call.1} parent=11 // pred_check
          %p320 = pneg %p201
        $region34: #{tpu_custom_call.1} parent=11 // pred_check_branch
          %322 = sbr.rel (%p320) target = $region36
        $region35: #{tpu_custom_call.1} parent=11 // pred_region
          %s324 = ssub.s32 512, 512
          %325 = vsyncadd [#allocation6], %s324
          %s326 = sshll.u32 [#allocation5], 4
          %s327 = int_to_ptr.vmem [resolvable:$true] %s326
          %332 = dma.hbm_to_vmem [thread:$0]  %s7, 512, %s327, [#allocation6], 128, 128, 8
        $region36: #{tpu_custom_call.1} parent=11 // pred_fallthru
          _
        // Predicated region
        $region37: #{tpu_custom_call.1} parent=11 // pred_check
          %p333 = pneg %p222
        $region38: #{tpu_custom_call.1} parent=11 // pred_check_branch
          %335 = sbr.rel (%p333) target = $region40
        $region39: #{tpu_custom_call.1} parent=11 // pred_region
          _
        $region40: #{tpu_custom_call.1} parent=11 // pred_fallthru
          _
        // Predicated region
        $region41: #{tpu_custom_call.1} parent=11 // pred_check
          %p336 = pneg %p243
        $region42: #{tpu_custom_call.1} parent=11 // pred_check_branch
          %338 = sbr.rel (%p336) target = $region44
        $region43: #{tpu_custom_call.1} parent=11 // pred_region
          _
        $region44: #{tpu_custom_call.1} parent=11 // pred_fallthru
          _
        // Predicated region
        $region45: #{tpu_custom_call.1} parent=11 // pred_check
          %p339 = pneg %p264
        $region46: #{tpu_custom_call.1} parent=11 // pred_check_branch
          %341 = sbr.rel (%p339) target = $region48
        $region47: #{tpu_custom_call.1} parent=11 // pred_region
          _
        $region48: #{tpu_custom_call.1} parent=11 // pred_fallthru
          _
      $region12: #{tpu_custom_call.1} parent=5 // pred_fallthru
        _
      %p342 = scmp.lt.s32.totalorder %s23, 2
      // Predicated region
      $region49: #{tpu_custom_call.1} parent=5 // pred_check
        %p343 = pneg %p342
      $region50: #{tpu_custom_call.1} parent=5 // pred_check_branch
        %345 = sbr.rel (%p343) target = $region52
      $region51: #{tpu_custom_call.1} parent=5 // pred_region
        // Predicated region
        $region53: #{tpu_custom_call.1} parent=51 // pred_check
          %p346 = pneg %p43
        $region54: #{tpu_custom_call.1} parent=51 // pred_check_branch
          %348 = sbr.rel (%p346) target = $region56
        $region55: #{tpu_custom_call.1} parent=51 // pred_region
          %s349 = smul.u32 32, %s23
          %p350 = scmp.lt.s32.totalorder %s349, 63
          %s351 = scalar_select %p350, %s349, 63
          %s352 = smul.addr %s351, 4
          %s353 = scalar_lea.vmem %s0, %s352
          %s354 = smul.u32 32, %s23
        $region56: #{tpu_custom_call.1} parent=51 // pred_fallthru
          _
        // Predicated region
        $region57: #{tpu_custom_call.1} parent=51 // pred_check
          %p355 = pneg %p69
        $region58: #{tpu_custom_call.1} parent=51 // pred_check_branch
          %357 = sbr.rel (%p355) target = $region60
        $region59: #{tpu_custom_call.1} parent=51 // pred_region
          %s358 = sand.u32 %s59, 1
          %s359 = scalar_lea.sflag [#allocation4], %s358
          %s360 = sand.u32 %s59, 1
          %s361 = smul.addr %s360, 128
          %s362 = scalar_lea.vmem [#allocation3], %s361
          %s363 = smul.u32 32, %s23
          %s365 = ssub.s32 2048, 2048
          %366 = vsyncadd %s359, %s365
          %s367 = smul.addr %s363, 64
          %s368 = scalar_lea.hbm %s1, %s367
          %s369 = sshll.u32 %s362, 4
          %s370 = int_to_ptr.vmem [resolvable:$true] %s369
          %375 = dma.hbm_to_vmem [thread:$0]  %s368, 2048, %s370, %s359, 64, 64, 4
        $region60: #{tpu_custom_call.1} parent=51 // pred_fallthru
          _
      $region52: #{tpu_custom_call.1} parent=5 // pred_fallthru
        _
      %p376 = scmp.le.s32.totalorder 1, %s23
      %p377 = scmp.lt.s32.totalorder %s23, 3
      %p378 = pnand %p376, %p377
      %p379 = pneg %p378
      // Predicated region
      $region61: #{tpu_custom_call.1} parent=5 // pred_check
        _
      $region62: #{tpu_custom_call.1} parent=5 // pred_check_branch
        %381 = sbr.rel (%p378) target = $region64
      $region63: #{tpu_custom_call.1} parent=5 // pred_region
        %s382 = ssub.s32 %s23, 1
        %s383 = sand.u32 %s62, 1
        %s384 = scalar_lea.sflag [#allocation4], %s383
        %s385 = sand.u32 %s62, 1
        %s386 = smul.addr %s385, 128
        %s387 = scalar_lea.vmem [#allocation3], %s386
        // Predicated region
        $region65: #{tpu_custom_call.1} parent=63 // pred_check
          %p388 = pneg %p75
        $region66: #{tpu_custom_call.1} parent=63 // pred_check_branch
          %390 = sbr.rel (%p388) target = $region68
        $region67: #{tpu_custom_call.1} parent=63 // pred_region
          %391 = dma.done %s384, 2048
        $region68: #{tpu_custom_call.1} parent=63 // pred_fallthru
          _
        // Predicated region
        $region69: #{tpu_custom_call.1} parent=63 // pred_check
          %p392 = pneg %p201
        $region70: #{tpu_custom_call.1} parent=63 // pred_check_branch
          %394 = sbr.rel (%p392) target = $region72
        $region71: #{tpu_custom_call.1} parent=63 // pred_region
          %395 = dma.done [#allocation6], 512
        $region72: #{tpu_custom_call.1} parent=63 // pred_fallthru
          _
        %s396 = smul.u32 32, %s28
        %p397 = scmp.lt.s32.totalorder %s396, 63
        %s398 = scalar_select %p397, %s396, 63
        %s399 = smul.addr %s398, 4
        %s400 = scalar_lea.vmem %s0, %s399
        %p401 = pneg %p49
        %p402 = pneg %p46
        %s403 = sand.u32 %s62, 1
        %s404 = scalar_lea.sflag [#allocation4], %s403
        %s405 = sand.u32 %s62, 1
        %s406 = smul.addr %s405, 128
        %s407 = scalar_lea.vmem [#allocation3], %s406
        %p408 = pneg %p75
        %p409 = pneg %p72
        %p410 = pneg %p96
        %p411 = pneg %p93
        %p412 = pneg %p117
        %p413 = pneg %p114
        %p414 = pneg %p138
        %p415 = pneg %p135
        %p416 = pneg %p159
        %p417 = pneg %p156
        %p418 = pneg %p180
        %p419 = pneg %p177
        %p420 = pneg %p201
        %p421 = pneg %p198
        %p422 = pneg %p222
        %p423 = pneg %p219
        %p424 = pneg %p243
        %p425 = pneg %p240
        %p426 = pneg %p264
        %p427 = pneg %p261
        %p428 = pneg %p290
        %p429 = pneg %p287
        %s430 = smul.u32 32, %s28
        %p431 = scmp.lt.s32.totalorder %s430, 63
        %s432 = scalar_select %p431, %s430, 63
        %s433 = smul.addr %s432, 8
        %s434 = scalar_lea.vmem %s11, %s433
        %s435 = smul.u32 32, %s28
        %p436 = scmp.lt.s32.totalorder %s435, 63
        %s437 = scalar_select %p436, %s435, 63
        %s438 = smul.addr %s437, 4
        %s439 = scalar_lea.vmem %s0, %s438
        %s440 = smul.u32 32, %s28
        %s441 = smul.u32 32, %s28
        %s442 = smul.u32 32, %s28
        %p443 = scmp.lt.s32.totalorder %s442, 63
        %s444 = scalar_select %p443, %s442, 63
        %s445 = smul.addr %s444, 8
        %s446 = scalar_lea.vmem %s11, %s445
        %s447 = smul.u32 32, %s28
        %v449 = vld [vmem:[%s387] sm:$0xf]
        %v450 = vld [vmem:[%s387 + $0x4] sm:$0xf]
        %v451 = vld [vmem:[%s387 + $0x8] sm:$0xf]
        %v452 = vld [vmem:[%s387 + $0xc] sm:$0xf]
        %v453 = vld [vmem:[%s387 + $0x10] sm:$0xf]
        %v454 = vld [vmem:[%s387 + $0x14] sm:$0xf]
        %v455 = vld [vmem:[%s387 + $0x18] sm:$0xf]
        %v456 = vld [vmem:[%s387 + $0x1c] sm:$0xf]
        %v457 = vld [vmem:[%s387 + $0x20] sm:$0xf]
        %v458 = vld [vmem:[%s387 + $0x24] sm:$0xf]
        %v459 = vld [vmem:[%s387 + $0x28] sm:$0xf]
        %v460 = vld [vmem:[%s387 + $0x2c] sm:$0xf]
        %v461 = vld [vmem:[%s387 + $0x30] sm:$0xf]
        %v462 = vld [vmem:[%s387 + $0x34] sm:$0xf]
        %v463 = vld [vmem:[%s387 + $0x38] sm:$0xf]
        %v464 = vld [vmem:[%s387 + $0x3c] sm:$0xf]
        %v465 = vld [vmem:[%s387 + $0x40] sm:$0xf]
        %v466 = vld [vmem:[%s387 + $0x44] sm:$0xf]
        %v467 = vld [vmem:[%s387 + $0x48] sm:$0xf]
        %v468 = vld [vmem:[%s387 + $0x4c] sm:$0xf]
        %v469 = vld [vmem:[%s387 + $0x50] sm:$0xf]
        %v470 = vld [vmem:[%s387 + $0x54] sm:$0xf]
        %v471 = vld [vmem:[%s387 + $0x58] sm:$0xf]
        %v472 = vld [vmem:[%s387 + $0x5c] sm:$0xf]
        %v473 = vld [vmem:[%s387 + $0x60] sm:$0xf]
        %v474 = vld [vmem:[%s387 + $0x64] sm:$0xf]
        %v475 = vld [vmem:[%s387 + $0x68] sm:$0xf]
        %v476 = vld [vmem:[%s387 + $0x6c] sm:$0xf]
        %v477 = vld [vmem:[%s387 + $0x70] sm:$0xf]
        %v478 = vld [vmem:[%s387 + $0x74] sm:$0xf]
        %v479 = vld [vmem:[%s387 + $0x78] sm:$0xf]
        %v480 = vld [vmem:[%s387 + $0x7c] sm:$0xf]
        %v481 = vld [vmem:[%s2] sm:$0xf]
        %v482 = vld [vmem:[%s2 + $0x4] sm:$0xf]
        %v483 = vld [vmem:[%s2 + $0x8] sm:$0xf]
        %v484 = vld [vmem:[%s2 + $0xc] sm:$0xf]
        %v485 = vld [vmem:[%s2 + $0x10] sm:$0xf]
        %v486 = vld [vmem:[%s2 + $0x14] sm:$0xf]
        %v487 = vld [vmem:[%s2 + $0x18] sm:$0xf]
        %v488 = vld [vmem:[%s2 + $0x1c] sm:$0xf]
        %v489 = vld [vmem:[%s2 + $0x20] sm:$0xf]
        %v490 = vld [vmem:[%s2 + $0x24] sm:$0xf]
        %v491 = vld [vmem:[%s2 + $0x28] sm:$0xf]
        %v492 = vld [vmem:[%s2 + $0x2c] sm:$0xf]
        %v493 = vld [vmem:[%s2 + $0x30] sm:$0xf]
        %v494 = vld [vmem:[%s2 + $0x34] sm:$0xf]
        %v495 = vld [vmem:[%s2 + $0x38] sm:$0xf]
        %v496 = vld [vmem:[%s2 + $0x3c] sm:$0xf]
        %v497 = vld [vmem:[%s439] sm:$0xf]
        %v498 = vld [vmem:[%s439 + $0x4] sm:$0xf]
        %v499 = vld [vmem:[%s439 + $0x8] sm:$0xf]
        %v500 = vld [vmem:[%s439 + $0xc] sm:$0xf]
        %v501 = vld [vmem:[%s439 + $0x10] sm:$0xf]
        %v502 = vld [vmem:[%s439 + $0x14] sm:$0xf]
        %v503 = vld [vmem:[%s439 + $0x18] sm:$0xf]
        %v504 = vld [vmem:[%s439 + $0x1c] sm:$0xf]
        %v505 = vld [vmem:[%s439 + $0x20] sm:$0xf]
        %v506 = vld [vmem:[%s439 + $0x24] sm:$0xf]
        %v507 = vld [vmem:[%s439 + $0x28] sm:$0xf]
        %v508 = vld [vmem:[%s439 + $0x2c] sm:$0xf]
        %v509 = vld [vmem:[%s439 + $0x30] sm:$0xf]
        %v510 = vld [vmem:[%s439 + $0x34] sm:$0xf]
        %v511 = vld [vmem:[%s439 + $0x38] sm:$0xf]
        %v512 = vld [vmem:[%s439 + $0x3c] sm:$0xf]
        %v513 = vld [vmem:[%s439 + $0x40] sm:$0xf]
        %v514 = vld [vmem:[%s439 + $0x44] sm:$0xf]
        %v515 = vld [vmem:[%s439 + $0x48] sm:$0xf]
        %v516 = vld [vmem:[%s439 + $0x4c] sm:$0xf]
        %v517 = vld [vmem:[%s439 + $0x50] sm:$0xf]
        %v518 = vld [vmem:[%s439 + $0x54] sm:$0xf]
        %v519 = vld [vmem:[%s439 + $0x58] sm:$0xf]
        %v520 = vld [vmem:[%s439 + $0x5c] sm:$0xf]
        %v521 = vld [vmem:[%s439 + $0x60] sm:$0xf]
        %v522 = vld [vmem:[%s439 + $0x64] sm:$0xf]
        %v523 = vld [vmem:[%s439 + $0x68] sm:$0xf]
        %v524 = vld [vmem:[%s439 + $0x6c] sm:$0xf]
        %v525 = vld [vmem:[%s439 + $0x70] sm:$0xf]
        %v526 = vld [vmem:[%s439 + $0x74] sm:$0xf]
        %v527 = vld [vmem:[%s439 + $0x78] sm:$0xf]
        %v528 = vld [vmem:[%s439 + $0x7c] sm:$0xf]
        %v529 = vld [vmem:[%s3] sm:$0xf]
        %v530 = vld [vmem:[%s3 + $0x4] sm:$0xf]
        %v531 = vld [vmem:[%s3 + $0x8] sm:$0xf]
        %v532 = vld [vmem:[%s3 + $0xc] sm:$0xf]
        %v533 = vld [vmem:[%s3 + $0x10] sm:$0xf]
        %v534 = vld [vmem:[%s3 + $0x14] sm:$0xf]
        %v535 = vld [vmem:[%s3 + $0x18] sm:$0xf]
        %v536 = vld [vmem:[%s3 + $0x1c] sm:$0xf]
        %v537 = vld [vmem:[%s3 + $0x20] sm:$0xf]
        %v538 = vld [vmem:[%s3 + $0x24] sm:$0xf]
        %v539 = vld [vmem:[%s3 + $0x28] sm:$0xf]
        %v540 = vld [vmem:[%s3 + $0x2c] sm:$0xf]
        %v541 = vld [vmem:[%s3 + $0x30] sm:$0xf]
        %v542 = vld [vmem:[%s3 + $0x34] sm:$0xf]
        %v543 = vld [vmem:[%s3 + $0x38] sm:$0xf]
        %v544 = vld [vmem:[%s3 + $0x3c] sm:$0xf]
        %v577 = vunpack.c.l.b16 %v497
        %v578 = vunpack.c.l.b16 %v498
        %v579 = vunpack.c.l.b16 %v499
        %v580 = vunpack.c.l.b16 %v500
        %v581 = vunpack.c.l.b16 %v501
        %v582 = vunpack.c.l.b16 %v502
        %v583 = vunpack.c.l.b16 %v503
        %v584 = vunpack.c.l.b16 %v504
        %v585 = vunpack.c.l.b16 %v505
        %v586 = vunpack.c.l.b16 %v506
        %v587 = vunpack.c.l.b16 %v507
        %v588 = vunpack.c.l.b16 %v508
        %v589 = vunpack.c.l.b16 %v509
        %v590 = vunpack.c.l.b16 %v510
        %v591 = vunpack.c.l.b16 %v511
        %v592 = vunpack.c.l.b16 %v512
        %v593 = vunpack.c.l.b16 %v513
        %v594 = vunpack.c.l.b16 %v514
        %v595 = vunpack.c.l.b16 %v515
        %v596 = vunpack.c.l.b16 %v516
        %v597 = vunpack.c.l.b16 %v517
        %v598 = vunpack.c.l.b16 %v518
        %v599 = vunpack.c.l.b16 %v519
        %v600 = vunpack.c.l.b16 %v520
        %v601 = vunpack.c.l.b16 %v521
        %v602 = vunpack.c.l.b16 %v522
        %v603 = vunpack.c.l.b16 %v523
        %v604 = vunpack.c.l.b16 %v524
        %v605 = vunpack.c.l.b16 %v525
        %v606 = vunpack.c.l.b16 %v526
        %v607 = vunpack.c.l.b16 %v527
        %v608 = vunpack.c.l.b16 %v528
        %v609 = vpack.c.b16 %v578, %v577
        %v610 = vpack.c.b16 %v580, %v579
        %v611 = vpack.c.b16 %v582, %v581
        %v612 = vpack.c.b16 %v584, %v583
        %v613 = vpack.c.b16 %v586, %v585
        %v614 = vpack.c.b16 %v588, %v587
        %v615 = vpack.c.b16 %v590, %v589
        %v616 = vpack.c.b16 %v592, %v591
        %v617 = vpack.c.b16 %v594, %v593
        %v618 = vpack.c.b16 %v596, %v595
        %v619 = vpack.c.b16 %v598, %v597
        %v620 = vpack.c.b16 %v600, %v599
        %v621 = vpack.c.b16 %v602, %v601
        %v622 = vpack.c.b16 %v604, %v603
        %v623 = vpack.c.b16 %v606, %v605
        %v624 = vpack.c.b16 %v608, %v607
        %v657 = vunpack.c.l.b16 %v529
        %v658 = vunpack.c.l.b16 %v530
        %v659 = vunpack.c.l.b16 %v531
        %v660 = vunpack.c.l.b16 %v532
        %v661 = vunpack.c.l.b16 %v533
        %v662 = vunpack.c.l.b16 %v534
        %v663 = vunpack.c.l.b16 %v535
        %v664 = vunpack.c.l.b16 %v536
        %v665 = vunpack.c.l.b16 %v537
        %v666 = vunpack.c.l.b16 %v538
        %v667 = vunpack.c.l.b16 %v539
        %v668 = vunpack.c.l.b16 %v540
        %v669 = vunpack.c.l.b16 %v541
        %v670 = vunpack.c.l.b16 %v542
        %v671 = vunpack.c.l.b16 %v543
        %v672 = vunpack.c.l.b16 %v544
        %v673 = vpack.c.b16 %v658, %v657
        %v674 = vpack.c.b16 %v660, %v659
        %v675 = vpack.c.b16 %v662, %v661
        %v676 = vpack.c.b16 %v664, %v663
        %v677 = vpack.c.b16 %v666, %v665
        %v678 = vpack.c.b16 %v668, %v667
        %v679 = vpack.c.b16 %v670, %v669
        %v680 = vpack.c.b16 %v672, %v671
        %689 = vmatprep.subr.bf16.mxu0 0
        %690 = vmatpush1.bf16.msra.mxu0 %v673
        %691 = vmatprep.subr.bf16.mxu0 0
        %692 = vmatpush1.bf16.msra.mxu0 %v674
        %693 = vmatprep.subr.bf16.mxu0 0
        %694 = vmatpush1.bf16.msra.mxu0 %v675
        %695 = vmatprep.subr.bf16.mxu0 0
        %696 = vmatpush1.bf16.msra.mxu0 %v676
        %697 = vmatprep.subr.bf16.mxu0 0
        %698 = vmatpush1.bf16.msra.mxu0 %v677
        %699 = vmatprep.subr.bf16.mxu0 0
        %700 = vmatpush1.bf16.msra.mxu0 %v678
        %701 = vmatprep.subr.bf16.mxu0 0
        %702 = vmatpush1.bf16.msra.mxu0 %v679
        %703 = vmatprep.subr.bf16.mxu0 0
        %704 = vmatpush1.bf16.msra.mxu0 %v680
        %705 = vmatprep.subr.bf16.mxu0 0
        %706 = vmatpush1.bf16.msra.mxu0 0
        %707 = vmatprep.subr.bf16.mxu0 0
        %708 = vmatpush1.bf16.msra.mxu0 0
        %709 = vmatprep.subr.bf16.mxu0 0
        %710 = vmatpush1.bf16.msra.mxu0 0
        %711 = vmatprep.subr.bf16.mxu0 0
        %712 = vmatpush1.bf16.msra.mxu0 0
        %713 = vmatprep.subr.bf16.mxu0 0
        %714 = vmatpush1.bf16.msra.mxu0 0
        %715 = vmatprep.subr.bf16.mxu0 0
        %716 = vmatpush1.bf16.msra.mxu0 0
        %717 = vmatprep.subr.bf16.mxu0 0
        %718 = vmatpush1.bf16.msra.mxu0 0
        %719 = vmatprep.subr.bf16.mxu0 0
        %720 = vmatpush1.bf16.msra.mxu0 0
        %721 = vmatprep.mubr.bf16.mxu0 0
        %722 = vmatmul.mubr.bf16.gmra.mrb[0].mxu0 %v609
        %v723 = vpop.f32.mrb[0].mxu0
        %v724 = vadd.f32 0.0, %v723
        %v725 = vpop.f32.mrb[0].mxu0
        %v726 = vpop.f32.mrb[0].mxu0
        %v727 = vadd.f32 0.0, %v726
        %v728 = vpop.f32.mrb[0].mxu0
        %729 = vmatprep.mubr.bf16.mxu0 0
        %730 = vmatmul.mubr.bf16.gmra.mrb[0].mxu0 %v610
        %v731 = vpop.f32.mrb[0].mxu0
        %v732 = vadd.f32 0.0, %v731
        %v733 = vpop.f32.mrb[0].mxu0
        %v734 = vpop.f32.mrb[0].mxu0
        %v735 = vadd.f32 0.0, %v734
        %v736 = vpop.f32.mrb[0].mxu0
        %737 = vmatprep.mubr.bf16.mxu0 0
        %738 = vmatmul.mubr.bf16.gmra.mrb[0].mxu0 %v611
        %v739 = vpop.f32.mrb[0].mxu0
        %v740 = vadd.f32 0.0, %v739
        %v741 = vpop.f32.mrb[0].mxu0
        %v742 = vpop.f32.mrb[0].mxu0
        %v743 = vadd.f32 0.0, %v742
        %v744 = vpop.f32.mrb[0].mxu0
        %745 = vmatprep.mubr.bf16.mxu0 0
        %746 = vmatmul.mubr.bf16.gmra.mrb[0].mxu0 %v612
        %v747 = vpop.f32.mrb[0].mxu0
        %v748 = vadd.f32 0.0, %v747
        %v749 = vpop.f32.mrb[0].mxu0
        %v750 = vpop.f32.mrb[0].mxu0
        %v751 = vadd.f32 0.0, %v750
        %v752 = vpop.f32.mrb[0].mxu0
        %753 = vmatprep.mubr.bf16.mxu0 0
        %754 = vmatmul.mubr.bf16.gmra.mrb[0].mxu0 %v613
        %v755 = vpop.f32.mrb[0].mxu0
        %v756 = vadd.f32 0.0, %v755
        %v757 = vpop.f32.mrb[0].mxu0
        %v758 = vpop.f32.mrb[0].mxu0
        %v759 = vadd.f32 0.0, %v758
        %v760 = vpop.f32.mrb[0].mxu0
        %761 = vmatprep.mubr.bf16.mxu0 0
        %762 = vmatmul.mubr.bf16.gmra.mrb[0].mxu0 %v614
        %v763 = vpop.f32.mrb[0].mxu0
        %v764 = vadd.f32 0.0, %v763
        %v765 = vpop.f32.mrb[0].mxu0
        %v766 = vpop.f32.mrb[0].mxu0
        %v767 = vadd.f32 0.0, %v766
        %v768 = vpop.f32.mrb[0].mxu0
        %769 = vmatprep.mubr.bf16.mxu0 0
        %770 = vmatmul.mubr.bf16.gmra.mrb[0].mxu0 %v615
        %v771 = vpop.f32.mrb[0].mxu0
        %v772 = vadd.f32 0.0, %v771
        %v773 = vpop.f32.mrb[0].mxu0
        %v774 = vpop.f32.mrb[0].mxu0
        %v775 = vadd.f32 0.0, %v774
        %v776 = vpop.f32.mrb[0].mxu0
        %777 = vmatprep.mubr.bf16.mxu0 0
        %778 = vmatmul.mubr.bf16.gmra.mrb[0].mxu0 %v616
        %v779 = vpop.f32.mrb[0].mxu0
        %v780 = vadd.f32 0.0, %v779
        %v781 = vpop.f32.mrb[0].mxu0
        %v782 = vpop.f32.mrb[0].mxu0
        %v783 = vadd.f32 0.0, %v782
        %v784 = vpop.f32.mrb[0].mxu0
        %785 = vmatprep.mubr.bf16.mxu0 0
        %786 = vmatmul.mubr.bf16.gmra.mrb[0].mxu0 %v617
        %v787 = vpop.f32.mrb[0].mxu0
        %v788 = vadd.f32 0.0, %v787
        %v789 = vpop.f32.mrb[0].mxu0
        %v790 = vpop.f32.mrb[0].mxu0
        %v791 = vadd.f32 0.0, %v790
        %v792 = vpop.f32.mrb[0].mxu0
        %793 = vmatprep.mubr.bf16.mxu0 0
        %794 = vmatmul.mubr.bf16.gmra.mrb[0].mxu0 %v618
        %v795 = vpop.f32.mrb[0].mxu0
        %v796 = vadd.f32 0.0, %v795
        %v797 = vpop.f32.mrb[0].mxu0
        %v798 = vpop.f32.mrb[0].mxu0
        %v799 = vadd.f32 0.0, %v798
        %v800 = vpop.f32.mrb[0].mxu0
        %801 = vmatprep.mubr.bf16.mxu0 0
        %802 = vmatmul.mubr.bf16.gmra.mrb[0].mxu0 %v619
        %v803 = vpop.f32.mrb[0].mxu0
        %v804 = vadd.f32 0.0, %v803
        %v805 = vpop.f32.mrb[0].mxu0
        %v806 = vpop.f32.mrb[0].mxu0
        %v807 = vadd.f32 0.0, %v806
        %v808 = vpop.f32.mrb[0].mxu0
        %809 = vmatprep.mubr.bf16.mxu0 0
        %810 = vmatmul.mubr.bf16.gmra.mrb[0].mxu0 %v620
        %v811 = vpop.f32.mrb[0].mxu0
        %v812 = vadd.f32 0.0, %v811
        %v813 = vpop.f32.mrb[0].mxu0
        %v814 = vpop.f32.mrb[0].mxu0
        %v815 = vadd.f32 0.0, %v814
        %v816 = vpop.f32.mrb[0].mxu0
        %817 = vmatprep.mubr.bf16.mxu0 0
        %818 = vmatmul.mubr.bf16.gmra.mrb[0].mxu0 %v621
        %v819 = vpop.f32.mrb[0].mxu0
        %v820 = vadd.f32 0.0, %v819
        %v821 = vpop.f32.mrb[0].mxu0
        %v822 = vpop.f32.mrb[0].mxu0
        %v823 = vadd.f32 0.0, %v822
        %v824 = vpop.f32.mrb[0].mxu0
        %825 = vmatprep.mubr.bf16.mxu0 0
        %826 = vmatmul.mubr.bf16.gmra.mrb[0].mxu0 %v622
        %v827 = vpop.f32.mrb[0].mxu0
        %v828 = vadd.f32 0.0, %v827
        %v829 = vpop.f32.mrb[0].mxu0
        %v830 = vpop.f32.mrb[0].mxu0
        %v831 = vadd.f32 0.0, %v830
        %v832 = vpop.f32.mrb[0].mxu0
        %833 = vmatprep.mubr.bf16.mxu0 0
        %834 = vmatmul.mubr.bf16.gmra.mrb[0].mxu0 %v623
        %v835 = vpop.f32.mrb[0].mxu0
        %v836 = vadd.f32 0.0, %v835
        %v837 = vpop.f32.mrb[0].mxu0
        %v838 = vpop.f32.mrb[0].mxu0
        %v839 = vadd.f32 0.0, %v838
        %v840 = vpop.f32.mrb[0].mxu0
        %841 = vmatprep.mubr.bf16.mxu0 0
        %842 = vmatmul.mubr.bf16.gmra.mrb[0].mxu0 %v624
        %v843 = vpop.f32.mrb[0].mxu0
        %v844 = vadd.f32 0.0, %v843
        %v845 = vpop.f32.mrb[0].mxu0
        %v846 = vpop.f32.mrb[0].mxu0
        %v847 = vadd.f32 0.0, %v846
        %v848 = vpop.f32.mrb[0].mxu0
        %849 = vdwg.mxu0
        %v882 = vunpack.c.l.b16 %v449
        %v883 = vunpack.c.l.b16 %v450
        %v884 = vunpack.c.l.b16 %v451
        %v885 = vunpack.c.l.b16 %v452
        %v886 = vunpack.c.l.b16 %v453
        %v887 = vunpack.c.l.b16 %v454
        %v888 = vunpack.c.l.b16 %v455
        %v889 = vunpack.c.l.b16 %v456
        %v890 = vunpack.c.l.b16 %v457
        %v891 = vunpack.c.l.b16 %v458
        %v892 = vunpack.c.l.b16 %v459
        %v893 = vunpack.c.l.b16 %v460
        %v894 = vunpack.c.l.b16 %v461
        %v895 = vunpack.c.l.b16 %v462
        %v896 = vunpack.c.l.b16 %v463
        %v897 = vunpack.c.l.b16 %v464
        %v898 = vunpack.c.l.b16 %v465
        %v899 = vunpack.c.l.b16 %v466
        %v900 = vunpack.c.l.b16 %v467
        %v901 = vunpack.c.l.b16 %v468
        %v902 = vunpack.c.l.b16 %v469
        %v903 = vunpack.c.l.b16 %v470
        %v904 = vunpack.c.l.b16 %v471
        %v905 = vunpack.c.l.b16 %v472
        %v906 = vunpack.c.l.b16 %v473
        %v907 = vunpack.c.l.b16 %v474
        %v908 = vunpack.c.l.b16 %v475
        %v909 = vunpack.c.l.b16 %v476
        %v910 = vunpack.c.l.b16 %v477
        %v911 = vunpack.c.l.b16 %v478
        %v912 = vunpack.c.l.b16 %v479
        %v913 = vunpack.c.l.b16 %v480
        %v914 = vpack.c.b16 %v883, %v882
        %v915 = vpack.c.b16 %v885, %v884
        %v916 = vpack.c.b16 %v887, %v886
        %v917 = vpack.c.b16 %v889, %v888
        %v918 = vpack.c.b16 %v891, %v890
        %v919 = vpack.c.b16 %v893, %v892
        %v920 = vpack.c.b16 %v895, %v894
        %v921 = vpack.c.b16 %v897, %v896
        %v922 = vpack.c.b16 %v899, %v898
        %v923 = vpack.c.b16 %v901, %v900
        %v924 = vpack.c.b16 %v903, %v902
        %v925 = vpack.c.b16 %v905, %v904
        %v926 = vpack.c.b16 %v907, %v906
        %v927 = vpack.c.b16 %v909, %v908
        %v928 = vpack.c.b16 %v911, %v910
        %v929 = vpack.c.b16 %v913, %v912
        %v962 = vunpack.c.l.b16 %v481
        %v963 = vunpack.c.l.b16 %v482
        %v964 = vunpack.c.l.b16 %v483
        %v965 = vunpack.c.l.b16 %v484
        %v966 = vunpack.c.l.b16 %v485
        %v967 = vunpack.c.l.b16 %v486
        %v968 = vunpack.c.l.b16 %v487
        %v969 = vunpack.c.l.b16 %v488
        %v970 = vunpack.c.l.b16 %v489
        %v971 = vunpack.c.l.b16 %v490
        %v972 = vunpack.c.l.b16 %v491
        %v973 = vunpack.c.l.b16 %v492
        %v974 = vunpack.c.l.b16 %v493
        %v975 = vunpack.c.l.b16 %v494
        %v976 = vunpack.c.l.b16 %v495
        %v977 = vunpack.c.l.b16 %v496
        %v978 = vpack.c.b16 %v963, %v962
        %v979 = vpack.c.b16 %v965, %v964
        %v980 = vpack.c.b16 %v967, %v966
        %v981 = vpack.c.b16 %v969, %v968
        %v982 = vpack.c.b16 %v971, %v970
        %v983 = vpack.c.b16 %v973, %v972
        %v984 = vpack.c.b16 %v975, %v974
        %v985 = vpack.c.b16 %v977, %v976
        %994 = vmatprep.subr.bf16.mxu0 0
        %995 = vmatpush1.bf16.msra.mxu0 %v978
        %996 = vmatprep.subr.bf16.mxu0 0
        %997 = vmatpush1.bf16.msra.mxu0 %v979
        %998 = vmatprep.subr.bf16.mxu0 0
        %999 = vmatpush1.bf16.msra.mxu0 %v980
        %1000 = vmatprep.subr.bf16.mxu0 0
        %1001 = vmatpush1.bf16.msra.mxu0 %v981
        %1002 = vmatprep.subr.bf16.mxu0 0
        %1003 = vmatpush1.bf16.msra.mxu0 %v982
        %1004 = vmatprep.subr.bf16.mxu0 0
        %1005 = vmatpush1.bf16.msra.mxu0 %v983
        %1006 = vmatprep.subr.bf16.mxu0 0
        %1007 = vmatpush1.bf16.msra.mxu0 %v984
        %1008 = vmatprep.subr.bf16.mxu0 0
        %1009 = vmatpush1.bf16.msra.mxu0 %v985
        %1010 = vmatprep.subr.bf16.mxu0 0
        %1011 = vmatpush1.bf16.msra.mxu0 0
        %1012 = vmatprep.subr.bf16.mxu0 0
        %1013 = vmatpush1.bf16.msra.mxu0 0
        %1014 = vmatprep.subr.bf16.mxu0 0
        %1015 = vmatpush1.bf16.msra.mxu0 0
        %1016 = vmatprep.subr.bf16.mxu0 0
        %1017 = vmatpush1.bf16.msra.mxu0 0
        %1018 = vmatprep.subr.bf16.mxu0 0
        %1019 = vmatpush1.bf16.msra.mxu0 0
        %1020 = vmatprep.subr.bf16.mxu0 0
        %1021 = vmatpush1.bf16.msra.mxu0 0
        %1022 = vmatprep.subr.bf16.mxu0 0
        %1023 = vmatpush1.bf16.msra.mxu0 0
        %1024 = vmatprep.subr.bf16.mxu0 0
        %1025 = vmatpush1.bf16.msra.mxu0 0
        %1026 = vmatprep.mubr.bf16.mxu0 0
        %1027 = vmatmul.mubr.bf16.gmra.mrb[0].mxu0 %v914
        %v1028 = vpop.f32.mrb[0].mxu0
        %v1029 = vadd.f32 %v724, %v1028
        %v1030 = vpop.f32.mrb[0].mxu0
        %v1031 = vpop.f32.mrb[0].mxu0
        %v1032 = vadd.f32 %v727, %v1031
        %v1033 = vpop.f32.mrb[0].mxu0
        %1034 = vmatprep.mubr.bf16.mxu0 0
        %1035 = vmatmul.mubr.bf16.gmra.mrb[0].mxu0 %v915
        %v1036 = vpop.f32.mrb[0].mxu0
        %v1037 = vadd.f32 %v732, %v1036
        %v1038 = vpop.f32.mrb[0].mxu0
        %v1039 = vpop.f32.mrb[0].mxu0
        %v1040 = vadd.f32 %v735, %v1039
        %v1041 = vpop.f32.mrb[0].mxu0
        %1042 = vmatprep.mubr.bf16.mxu0 0
        %1043 = vmatmul.mubr.bf16.gmra.mrb[0].mxu0 %v916
        %v1044 = vpop.f32.mrb[0].mxu0
        %v1045 = vadd.f32 %v740, %v1044
        %v1046 = vpop.f32.mrb[0].mxu0
        %v1047 = vpop.f32.mrb[0].mxu0
        %v1048 = vadd.f32 %v743, %v1047
        %v1049 = vpop.f32.mrb[0].mxu0
        %1050 = vmatprep.mubr.bf16.mxu0 0
        %1051 = vmatmul.mubr.bf16.gmra.mrb[0].mxu0 %v917
        %v1052 = vpop.f32.mrb[0].mxu0
        %v1053 = vadd.f32 %v748, %v1052
        %v1054 = vpop.f32.mrb[0].mxu0
        %v1055 = vpop.f32.mrb[0].mxu0
        %v1056 = vadd.f32 %v751, %v1055
        %v1057 = vpop.f32.mrb[0].mxu0
        %1058 = vmatprep.mubr.bf16.mxu0 0
        %1059 = vmatmul.mubr.bf16.gmra.mrb[0].mxu0 %v918
        %v1060 = vpop.f32.mrb[0].mxu0
        %v1061 = vadd.f32 %v756, %v1060
        %v1062 = vpop.f32.mrb[0].mxu0
        %v1063 = vpop.f32.mrb[0].mxu0
        %v1064 = vadd.f32 %v759, %v1063
        %v1065 = vpop.f32.mrb[0].mxu0
        %1066 = vmatprep.mubr.bf16.mxu0 0
        %1067 = vmatmul.mubr.bf16.gmra.mrb[0].mxu0 %v919
        %v1068 = vpop.f32.mrb[0].mxu0
        %v1069 = vadd.f32 %v764, %v1068
        %v1070 = vpop.f32.mrb[0].mxu0
        %v1071 = vpop.f32.mrb[0].mxu0
        %v1072 = vadd.f32 %v767, %v1071
        %v1073 = vpop.f32.mrb[0].mxu0
        %1074 = vmatprep.mubr.bf16.mxu0 0
        %1075 = vmatmul.mubr.bf16.gmra.mrb[0].mxu0 %v920
        %v1076 = vpop.f32.mrb[0].mxu0
        %v1077 = vadd.f32 %v772, %v1076
        %v1078 = vpop.f32.mrb[0].mxu0
        %v1079 = vpop.f32.mrb[0].mxu0
        %v1080 = vadd.f32 %v775, %v1079
        %v1081 = vpop.f32.mrb[0].mxu0
        %1082 = vmatprep.mubr.bf16.mxu0 0
        %1083 = vmatmul.mubr.bf16.gmra.mrb[0].mxu0 %v921
        %v1084 = vpop.f32.mrb[0].mxu0
        %v1085 = vadd.f32 %v780, %v1084
        %v1086 = vpop.f32.mrb[0].mxu0
        %v1087 = vpop.f32.mrb[0].mxu0
        %v1088 = vadd.f32 %v783, %v1087
        %v1089 = vpop.f32.mrb[0].mxu0
        %1090 = vmatprep.mubr.bf16.mxu0 0
        %1091 = vmatmul.mubr.bf16.gmra.mrb[0].mxu0 %v922
        %v1092 = vpop.f32.mrb[0].mxu0
        %v1093 = vadd.f32 %v788, %v1092
        %v1094 = vpop.f32.mrb[0].mxu0
        %v1095 = vpop.f32.mrb[0].mxu0
        %v1096 = vadd.f32 %v791, %v1095
        %v1097 = vpop.f32.mrb[0].mxu0
        %1098 = vmatprep.mubr.bf16.mxu0 0
        %1099 = vmatmul.mubr.bf16.gmra.mrb[0].mxu0 %v923
        %v1100 = vpop.f32.mrb[0].mxu0
        %v1101 = vadd.f32 %v796, %v1100
        %v1102 = vpop.f32.mrb[0].mxu0
        %v1103 = vpop.f32.mrb[0].mxu0
        %v1104 = vadd.f32 %v799, %v1103
        %v1105 = vpop.f32.mrb[0].mxu0
        %1106 = vmatprep.mubr.bf16.mxu0 0
        %1107 = vmatmul.mubr.bf16.gmra.mrb[0].mxu0 %v924
        %v1108 = vpop.f32.mrb[0].mxu0
        %v1109 = vadd.f32 %v804, %v1108
        %v1110 = vpop.f32.mrb[0].mxu0
        %v1111 = vpop.f32.mrb[0].mxu0
        %v1112 = vadd.f32 %v807, %v1111
        %v1113 = vpop.f32.mrb[0].mxu0
        %1114 = vmatprep.mubr.bf16.mxu0 0
        %1115 = vmatmul.mubr.bf16.gmra.mrb[0].mxu0 %v925
        %v1116 = vpop.f32.mrb[0].mxu0
        %v1117 = vadd.f32 %v812, %v1116
        %v1118 = vpop.f32.mrb[0].mxu0
        %v1119 = vpop.f32.mrb[0].mxu0
        %v1120 = vadd.f32 %v815, %v1119
        %v1121 = vpop.f32.mrb[0].mxu0
        %1122 = vmatprep.mubr.bf16.mxu0 0
        %1123 = vmatmul.mubr.bf16.gmra.mrb[0].mxu0 %v926
        %v1124 = vpop.f32.mrb[0].mxu0
        %v1125 = vadd.f32 %v820, %v1124
        %v1126 = vpop.f32.mrb[0].mxu0
        %v1127 = vpop.f32.mrb[0].mxu0
        %v1128 = vadd.f32 %v823, %v1127
        %v1129 = vpop.f32.mrb[0].mxu0
        %1130 = vmatprep.mubr.bf16.mxu0 0
        %1131 = vmatmul.mubr.bf16.gmra.mrb[0].mxu0 %v927
        %v1132 = vpop.f32.mrb[0].mxu0
        %v1133 = vadd.f32 %v828, %v1132
        %v1134 = vpop.f32.mrb[0].mxu0
        %v1135 = vpop.f32.mrb[0].mxu0
        %v1136 = vadd.f32 %v831, %v1135
        %v1137 = vpop.f32.mrb[0].mxu0
        %1138 = vmatprep.mubr.bf16.mxu0 0
        %1139 = vmatmul.mubr.bf16.gmra.mrb[0].mxu0 %v928
        %v1140 = vpop.f32.mrb[0].mxu0
        %v1141 = vadd.f32 %v836, %v1140
        %v1142 = vpop.f32.mrb[0].mxu0
        %v1143 = vpop.f32.mrb[0].mxu0
        %v1144 = vadd.f32 %v839, %v1143
        %v1145 = vpop.f32.mrb[0].mxu0
        %1146 = vmatprep.mubr.bf16.mxu0 0
        %1147 = vmatmul.mubr.bf16.gmra.mrb[0].mxu0 %v929
        %v1148 = vpop.f32.mrb[0].mxu0
        %v1149 = vadd.f32 %v844, %v1148
        %v1150 = vpop.f32.mrb[0].mxu0
        %v1151 = vpop.f32.mrb[0].mxu0
        %v1152 = vadd.f32 %v847, %v1151
        %v1153 = vpop.f32.mrb[0].mxu0
        %1154 = vdwg.mxu0
        %v1155 = vld [vmem:[%s4] sm:$0x1]
        %v1157 = vlaneseq
        %v1158 = vshrl.u32 %v1157, 7
        %v1159 = vsub.s32 0, %v1158
        %v1160 = vrot.slane %v1155, %v1159
        %v1162 = vadd.f32 %v1029, %v1160
        %v1163 = vadd.f32 %v1032, %v1160
        %v1164 = vadd.f32 %v1037, %v1160
        %v1165 = vadd.f32 %v1040, %v1160
        %v1166 = vadd.f32 %v1045, %v1160
        %v1167 = vadd.f32 %v1048, %v1160
        %v1168 = vadd.f32 %v1053, %v1160
        %v1169 = vadd.f32 %v1056, %v1160
        %v1170 = vadd.f32 %v1061, %v1160
        %v1171 = vadd.f32 %v1064, %v1160
        %v1172 = vadd.f32 %v1069, %v1160
        %v1173 = vadd.f32 %v1072, %v1160
        %v1174 = vadd.f32 %v1077, %v1160
        %v1175 = vadd.f32 %v1080, %v1160
        %v1176 = vadd.f32 %v1085, %v1160
        %v1177 = vadd.f32 %v1088, %v1160
        %v1178 = vadd.f32 %v1093, %v1160
        %v1179 = vadd.f32 %v1096, %v1160
        %v1180 = vadd.f32 %v1101, %v1160
        %v1181 = vadd.f32 %v1104, %v1160
        %v1182 = vadd.f32 %v1109, %v1160
        %v1183 = vadd.f32 %v1112, %v1160
        %v1184 = vadd.f32 %v1117, %v1160
        %v1185 = vadd.f32 %v1120, %v1160
        %v1186 = vadd.f32 %v1125, %v1160
        %v1187 = vadd.f32 %v1128, %v1160
        %v1188 = vadd.f32 %v1133, %v1160
        %v1189 = vadd.f32 %v1136, %v1160
        %v1190 = vadd.f32 %v1141, %v1160
        %v1191 = vadd.f32 %v1144, %v1160
        %v1192 = vadd.f32 %v1149, %v1160
        %v1193 = vadd.f32 %v1152, %v1160
        %v1194 = vmax.f32 %v1162, 0.0
        %v1195 = vmax.f32 %v1163, 0.0
        %v1196 = vmax.f32 %v1164, 0.0
        %v1197 = vmax.f32 %v1165, 0.0
        %v1198 = vmax.f32 %v1166, 0.0
        %v1199 = vmax.f32 %v1167, 0.0
        %v1200 = vmax.f32 %v1168, 0.0
        %v1201 = vmax.f32 %v1169, 0.0
        %v1202 = vmax.f32 %v1170, 0.0
        %v1203 = vmax.f32 %v1171, 0.0
        %v1204 = vmax.f32 %v1172, 0.0
        %v1205 = vmax.f32 %v1173, 0.0
        %v1206 = vmax.f32 %v1174, 0.0
        %v1207 = vmax.f32 %v1175, 0.0
        %v1208 = vmax.f32 %v1176, 0.0
        %v1209 = vmax.f32 %v1177, 0.0
        %v1210 = vmax.f32 %v1178, 0.0
        %v1211 = vmax.f32 %v1179, 0.0
        %v1212 = vmax.f32 %v1180, 0.0
        %v1213 = vmax.f32 %v1181, 0.0
        %v1214 = vmax.f32 %v1182, 0.0
        %v1215 = vmax.f32 %v1183, 0.0
        %v1216 = vmax.f32 %v1184, 0.0
        %v1217 = vmax.f32 %v1185, 0.0
        %v1218 = vmax.f32 %v1186, 0.0
        %v1219 = vmax.f32 %v1187, 0.0
        %v1220 = vmax.f32 %v1188, 0.0
        %v1221 = vmax.f32 %v1189, 0.0
        %v1222 = vmax.f32 %v1190, 0.0
        %v1223 = vmax.f32 %v1191, 0.0
        %v1224 = vmax.f32 %v1192, 0.0
        %v1225 = vmax.f32 %v1193, 0.0
        %v1226 = vld [vmem:[%s5] sm:$0xff]
        %v1227 = vld [vmem:[%s5 + $0x8] sm:$0xff]
        %v1228 = vld [vmem:[%s5 + $0x10] sm:$0xff]
        %v1229 = vld [vmem:[%s5 + $0x18] sm:$0xff]
        %v1230 = vld [vmem:[%s5 + $0x20] sm:$0xff]
        %v1231 = vld [vmem:[%s5 + $0x28] sm:$0xff]
        %v1232 = vld [vmem:[%s5 + $0x30] sm:$0xff]
        %v1233 = vld [vmem:[%s5 + $0x38] sm:$0xff]
        %v1234 = vld [vmem:[%s6] sm:$0x1]
        %v1236 = vlaneseq
        %v1237 = vshrl.u32 %v1236, 7
        %v1238 = vsub.s32 0, %v1237
        %v1239 = vrot.slane %v1234, %v1238
        %vm1241 = vcmask 523264
        %v1243 = vsel %vm1241, %v1194, 0
        %v1246 = vsel %vm1241, %v1195, 0
        %v1249 = vsel %vm1241, %v1196, 0
        %v1252 = vsel %vm1241, %v1197, 0
        %v1255 = vsel %vm1241, %v1198, 0
        %v1258 = vsel %vm1241, %v1199, 0
        %v1261 = vsel %vm1241, %v1200, 0
        %v1264 = vsel %vm1241, %v1201, 0
        %v1267 = vsel %vm1241, %v1202, 0
        %v1270 = vsel %vm1241, %v1203, 0
        %v1273 = vsel %vm1241, %v1204, 0
        %v1276 = vsel %vm1241, %v1205, 0
        %v1279 = vsel %vm1241, %v1206, 0
        %v1282 = vsel %vm1241, %v1207, 0
        %v1285 = vsel %vm1241, %v1208, 0
        %v1288 = vsel %vm1241, %v1209, 0
        %v1291 = vsel %vm1241, %v1210, 0
        %v1294 = vsel %vm1241, %v1211, 0
        %v1297 = vsel %vm1241, %v1212, 0
        %v1300 = vsel %vm1241, %v1213, 0
        %v1303 = vsel %vm1241, %v1214, 0
        %v1306 = vsel %vm1241, %v1215, 0
        %v1309 = vsel %vm1241, %v1216, 0
        %v1312 = vsel %vm1241, %v1217, 0
        %v1315 = vsel %vm1241, %v1218, 0
        %v1318 = vsel %vm1241, %v1219, 0
        %v1321 = vsel %vm1241, %v1220, 0
        %v1324 = vsel %vm1241, %v1221, 0
        %v1327 = vsel %vm1241, %v1222, 0
        %v1330 = vsel %vm1241, %v1223, 0
        %v1333 = vsel %vm1241, %v1224, 0
        %v1336 = vsel %vm1241, %v1225, 0
        %1338 = vmatprep.subr.mxu0 0.0
        %1339 = vmatpush1.msra.mxu0 %v1226
        %1340 = vmatprep.subr.mxu0 0.0
        %1341 = vmatpush1.msra.mxu0 %v1227
        %1342 = vmatprep.subr.mxu0 0.0
        %1343 = vmatpush1.msra.mxu0 %v1228
        %1344 = vmatprep.subr.mxu0 0.0
        %1345 = vmatpush1.msra.mxu0 %v1229
        %1346 = vmatprep.subr.mxu0 0.0
        %1347 = vmatpush1.msra.mxu0 %v1230
        %1348 = vmatprep.subr.mxu0 0.0
        %1349 = vmatpush1.msra.mxu0 %v1231
        %1350 = vmatprep.subr.mxu0 0.0
        %1351 = vmatpush1.msra.mxu0 %v1232
        %1352 = vmatprep.subr.mxu0 0.0
        %1353 = vmatpush1.msra.mxu0 %v1233
        %1354 = vmatprep.subr.mxu0 0.0
        %1355 = vmatpush1.msra.mxu0 0.0
        %1356 = vmatprep.subr.mxu0 0.0
        %1357 = vmatpush1.msra.mxu0 0.0
        %1358 = vmatprep.subr.mxu0 0.0
        %1359 = vmatpush1.msra.mxu0 0.0
        %1360 = vmatprep.subr.mxu0 0.0
        %1361 = vmatpush1.msra.mxu0 0.0
        %1362 = vmatprep.subr.mxu0 0.0
        %1363 = vmatpush1.msra.mxu0 0.0
        %1364 = vmatprep.subr.mxu0 0.0
        %1365 = vmatpush1.msra.mxu0 0.0
        %1366 = vmatprep.subr.mxu0 0.0
        %1367 = vmatpush1.msra.mxu0 0.0
        %1368 = vmatprep.subr.mxu0 0.0
        %1369 = vmatpush1.msra.mxu0 0.0
        %1370 = vmatprep.subr.mxu0 0.0
        %1371 = vmatpush1.msra.mxu0 0.0
        %1372 = vmatprep.subr.mxu0 0.0
        %1373 = vmatpush1.msra.mxu0 0.0
        %1374 = vmatprep.subr.mxu0 0.0
        %1375 = vmatpush1.msra.mxu0 0.0
        %1376 = vmatprep.subr.mxu0 0.0
        %1377 = vmatpush1.msra.mxu0 0.0
        %1378 = vmatprep.subr.mxu0 0.0
        %1379 = vmatpush1.msra.mxu0 0.0
        %1380 = vmatprep.subr.mxu0 0.0
        %1381 = vmatpush1.msra.mxu0 0.0
        %1382 = vmatprep.subr.mxu0 0.0
        %1383 = vmatpush1.msra.mxu0 0.0
        %1384 = vmatprep.subr.mxu0 0.0
        %1385 = vmatpush1.msra.mxu0 0.0
        %1386 = vmatprep.subr.mxu0 0.0
        %1387 = vmatpush1.msra.mxu0 0.0
        %1388 = vmatprep.subr.mxu0 0.0
        %1389 = vmatpush1.msra.mxu0 0.0
        %1390 = vmatprep.subr.mxu0 0.0
        %1391 = vmatpush1.msra.mxu0 0.0
        %1392 = vmatprep.subr.mxu0 0.0
        %1393 = vmatpush1.msra.mxu0 0.0
        %1394 = vmatprep.subr.mxu0 0.0
        %1395 = vmatpush1.msra.mxu0 0.0
        %1396 = vmatprep.subr.mxu0 0.0
        %1397 = vmatpush1.msra.mxu0 0.0
        %1398 = vmatprep.subr.mxu0 0.0
        %1399 = vmatpush1.msra.mxu0 0.0
        %1400 = vmatprep.subr.mxu0 0.0
        %1401 = vmatpush1.msra.mxu0 0.0
        %1402 = vmatprep.mubr.f32.mxu0 0.0
        %1403 = vmatmul.mubr.f32.gmra.mrb[0].mxu0 %v1243
        %v1404 = vpop.f32.mrb[0].mxu0
        %v1405 = vadd.f32 %v1239, %v1404
        %v1406 = vpop.f32.mrb[0].mxu0
        %1407 = vmatprep.mubr.f32.mxu0 0.0
        %1408 = vmatmul.mubr.f32.gmra.mrb[0].mxu0 %v1246
        %v1409 = vpop.f32.mrb[0].mxu0
        %v1410 = vadd.f32 %v1239, %v1409
        %v1411 = vpop.f32.mrb[0].mxu0
        %1412 = vmatprep.mubr.f32.mxu0 0.0
        %1413 = vmatmul.mubr.f32.gmra.mrb[0].mxu0 %v1249
        %v1414 = vpop.f32.mrb[0].mxu0
        %v1415 = vadd.f32 %v1239, %v1414
        %v1416 = vpop.f32.mrb[0].mxu0
        %1417 = vmatprep.mubr.f32.mxu0 0.0
        %1418 = vmatmul.mubr.f32.gmra.mrb[0].mxu0 %v1252
        %v1419 = vpop.f32.mrb[0].mxu0
        %v1420 = vadd.f32 %v1239, %v1419
        %v1421 = vpop.f32.mrb[0].mxu0
        %1422 = vmatprep.mubr.f32.mxu0 0.0
        %1423 = vmatmul.mubr.f32.gmra.mrb[0].mxu0 %v1255
        %v1424 = vpop.f32.mrb[0].mxu0
        %v1425 = vadd.f32 %v1239, %v1424
        %v1426 = vpop.f32.mrb[0].mxu0
        %1427 = vmatprep.mubr.f32.mxu0 0.0
        %1428 = vmatmul.mubr.f32.gmra.mrb[0].mxu0 %v1258
        %v1429 = vpop.f32.mrb[0].mxu0
        %v1430 = vadd.f32 %v1239, %v1429
        %v1431 = vpop.f32.mrb[0].mxu0
        %1432 = vmatprep.mubr.f32.mxu0 0.0
        %1433 = vmatmul.mubr.f32.gmra.mrb[0].mxu0 %v1261
        %v1434 = vpop.f32.mrb[0].mxu0
        %v1435 = vadd.f32 %v1239, %v1434
        %v1436 = vpop.f32.mrb[0].mxu0
        %1437 = vmatprep.mubr.f32.mxu0 0.0
        %1438 = vmatmul.mubr.f32.gmra.mrb[0].mxu0 %v1264
        %v1439 = vpop.f32.mrb[0].mxu0
        %v1440 = vadd.f32 %v1239, %v1439
        %v1441 = vpop.f32.mrb[0].mxu0
        %1442 = vmatprep.mubr.f32.mxu0 0.0
        %1443 = vmatmul.mubr.f32.gmra.mrb[0].mxu0 %v1267
        %v1444 = vpop.f32.mrb[0].mxu0
        %v1445 = vadd.f32 %v1239, %v1444
        %v1446 = vpop.f32.mrb[0].mxu0
        %1447 = vmatprep.mubr.f32.mxu0 0.0
        %1448 = vmatmul.mubr.f32.gmra.mrb[0].mxu0 %v1270
        %v1449 = vpop.f32.mrb[0].mxu0
        %v1450 = vadd.f32 %v1239, %v1449
        %v1451 = vpop.f32.mrb[0].mxu0
        %1452 = vmatprep.mubr.f32.mxu0 0.0
        %1453 = vmatmul.mubr.f32.gmra.mrb[0].mxu0 %v1273
        %v1454 = vpop.f32.mrb[0].mxu0
        %v1455 = vadd.f32 %v1239, %v1454
        %v1456 = vpop.f32.mrb[0].mxu0
        %1457 = vmatprep.mubr.f32.mxu0 0.0
        %1458 = vmatmul.mubr.f32.gmra.mrb[0].mxu0 %v1276
        %v1459 = vpop.f32.mrb[0].mxu0
        %v1460 = vadd.f32 %v1239, %v1459
        %v1461 = vpop.f32.mrb[0].mxu0
        %1462 = vmatprep.mubr.f32.mxu0 0.0
        %1463 = vmatmul.mubr.f32.gmra.mrb[0].mxu0 %v1279
        %v1464 = vpop.f32.mrb[0].mxu0
        %v1465 = vadd.f32 %v1239, %v1464
        %v1466 = vpop.f32.mrb[0].mxu0
        %1467 = vmatprep.mubr.f32.mxu0 0.0
        %1468 = vmatmul.mubr.f32.gmra.mrb[0].mxu0 %v1282
        %v1469 = vpop.f32.mrb[0].mxu0
        %v1470 = vadd.f32 %v1239, %v1469
        %v1471 = vpop.f32.mrb[0].mxu0
        %1472 = vmatprep.mubr.f32.mxu0 0.0
        %1473 = vmatmul.mubr.f32.gmra.mrb[0].mxu0 %v1285
        %v1474 = vpop.f32.mrb[0].mxu0
        %v1475 = vadd.f32 %v1239, %v1474
        %v1476 = vpop.f32.mrb[0].mxu0
        %1477 = vmatprep.mubr.f32.mxu0 0.0
        %1478 = vmatmul.mubr.f32.gmra.mrb[0].mxu0 %v1288
        %v1479 = vpop.f32.mrb[0].mxu0
        %v1480 = vadd.f32 %v1239, %v1479
        %v1481 = vpop.f32.mrb[0].mxu0
        %1482 = vmatprep.mubr.f32.mxu0 0.0
        %1483 = vmatmul.mubr.f32.gmra.mrb[0].mxu0 %v1291
        %v1484 = vpop.f32.mrb[0].mxu0
        %v1485 = vadd.f32 %v1239, %v1484
        %v1486 = vpop.f32.mrb[0].mxu0
        %1487 = vmatprep.mubr.f32.mxu0 0.0
        %1488 = vmatmul.mubr.f32.gmra.mrb[0].mxu0 %v1294
        %v1489 = vpop.f32.mrb[0].mxu0
        %v1490 = vadd.f32 %v1239, %v1489
        %v1491 = vpop.f32.mrb[0].mxu0
        %1492 = vmatprep.mubr.f32.mxu0 0.0
        %1493 = vmatmul.mubr.f32.gmra.mrb[0].mxu0 %v1297
        %v1494 = vpop.f32.mrb[0].mxu0
        %v1495 = vadd.f32 %v1239, %v1494
        %v1496 = vpop.f32.mrb[0].mxu0
        %1497 = vmatprep.mubr.f32.mxu0 0.0
        %1498 = vmatmul.mubr.f32.gmra.mrb[0].mxu0 %v1300
        %v1499 = vpop.f32.mrb[0].mxu0
        %v1500 = vadd.f32 %v1239, %v1499
        %v1501 = vpop.f32.mrb[0].mxu0
        %1502 = vmatprep.mubr.f32.mxu0 0.0
        %1503 = vmatmul.mubr.f32.gmra.mrb[0].mxu0 %v1303
        %v1504 = vpop.f32.mrb[0].mxu0
        %v1505 = vadd.f32 %v1239, %v1504
        %v1506 = vpop.f32.mrb[0].mxu0
        %1507 = vmatprep.mubr.f32.mxu0 0.0
        %1508 = vmatmul.mubr.f32.gmra.mrb[0].mxu0 %v1306
        %v1509 = vpop.f32.mrb[0].mxu0
        %v1510 = vadd.f32 %v1239, %v1509
        %v1511 = vpop.f32.mrb[0].mxu0
        %1512 = vmatprep.mubr.f32.mxu0 0.0
        %1513 = vmatmul.mubr.f32.gmra.mrb[0].mxu0 %v1309
        %v1514 = vpop.f32.mrb[0].mxu0
        %v1515 = vadd.f32 %v1239, %v1514
        %v1516 = vpop.f32.mrb[0].mxu0
        %1517 = vmatprep.mubr.f32.mxu0 0.0
        %1518 = vmatmul.mubr.f32.gmra.mrb[0].mxu0 %v1312
        %v1519 = vpop.f32.mrb[0].mxu0
        %v1520 = vadd.f32 %v1239, %v1519
        %v1521 = vpop.f32.mrb[0].mxu0
        %1522 = vmatprep.mubr.f32.mxu0 0.0
        %1523 = vmatmul.mubr.f32.gmra.mrb[0].mxu0 %v1315
        %v1524 = vpop.f32.mrb[0].mxu0
        %v1525 = vadd.f32 %v1239, %v1524
        %v1526 = vpop.f32.mrb[0].mxu0
        %1527 = vmatprep.mubr.f32.mxu0 0.0
        %1528 = vmatmul.mubr.f32.gmra.mrb[0].mxu0 %v1318
        %v1529 = vpop.f32.mrb[0].mxu0
        %v1530 = vadd.f32 %v1239, %v1529
        %v1531 = vpop.f32.mrb[0].mxu0
        %1532 = vmatprep.mubr.f32.mxu0 0.0
        %1533 = vmatmul.mubr.f32.gmra.mrb[0].mxu0 %v1321
        %v1534 = vpop.f32.mrb[0].mxu0
        %v1535 = vadd.f32 %v1239, %v1534
        %v1536 = vpop.f32.mrb[0].mxu0
        %1537 = vmatprep.mubr.f32.mxu0 0.0
        %1538 = vmatmul.mubr.f32.gmra.mrb[0].mxu0 %v1324
        %v1539 = vpop.f32.mrb[0].mxu0
        %v1540 = vadd.f32 %v1239, %v1539
        %v1541 = vpop.f32.mrb[0].mxu0
        %1542 = vmatprep.mubr.f32.mxu0 0.0
        %1543 = vmatmul.mubr.f32.gmra.mrb[0].mxu0 %v1327
        %v1544 = vpop.f32.mrb[0].mxu0
        %v1545 = vadd.f32 %v1239, %v1544
        %v1546 = vpop.f32.mrb[0].mxu0
        %1547 = vmatprep.mubr.f32.mxu0 0.0
        %1548 = vmatmul.mubr.f32.gmra.mrb[0].mxu0 %v1330
        %v1549 = vpop.f32.mrb[0].mxu0
        %v1550 = vadd.f32 %v1239, %v1549
        %v1551 = vpop.f32.mrb[0].mxu0
        %1552 = vmatprep.mubr.f32.mxu0 0.0
        %1553 = vmatmul.mubr.f32.gmra.mrb[0].mxu0 %v1333
        %v1554 = vpop.f32.mrb[0].mxu0
        %v1555 = vadd.f32 %v1239, %v1554
        %v1556 = vpop.f32.mrb[0].mxu0
        %1557 = vmatprep.mubr.f32.mxu0 0.0
        %1558 = vmatmul.mubr.f32.gmra.mrb[0].mxu0 %v1336
        %v1559 = vpop.f32.mrb[0].mxu0
        %v1560 = vadd.f32 %v1239, %v1559
        %v1561 = vpop.f32.mrb[0].mxu0
        %1562 = vdwg.mxu0
        %v1563 = vmax.f32 %v1405, 0.0
        %v1564 = vmax.f32 %v1410, 0.0
        %v1565 = vmax.f32 %v1415, 0.0
        %v1566 = vmax.f32 %v1420, 0.0
        %v1567 = vmax.f32 %v1425, 0.0
        %v1568 = vmax.f32 %v1430, 0.0
        %v1569 = vmax.f32 %v1435, 0.0
        %v1570 = vmax.f32 %v1440, 0.0
        %v1571 = vmax.f32 %v1445, 0.0
        %v1572 = vmax.f32 %v1450, 0.0
        %v1573 = vmax.f32 %v1455, 0.0
        %v1574 = vmax.f32 %v1460, 0.0
        %v1575 = vmax.f32 %v1465, 0.0
        %v1576 = vmax.f32 %v1470, 0.0
        %v1577 = vmax.f32 %v1475, 0.0
        %v1578 = vmax.f32 %v1480, 0.0
        %v1579 = vmax.f32 %v1485, 0.0
        %v1580 = vmax.f32 %v1490, 0.0
        %v1581 = vmax.f32 %v1495, 0.0
        %v1582 = vmax.f32 %v1500, 0.0
        %v1583 = vmax.f32 %v1505, 0.0
        %v1584 = vmax.f32 %v1510, 0.0
        %v1585 = vmax.f32 %v1515, 0.0
        %v1586 = vmax.f32 %v1520, 0.0
        %v1587 = vmax.f32 %v1525, 0.0
        %v1588 = vmax.f32 %v1530, 0.0
        %v1589 = vmax.f32 %v1535, 0.0
        %v1590 = vmax.f32 %v1540, 0.0
        %v1591 = vmax.f32 %v1545, 0.0
        %v1592 = vmax.f32 %v1550, 0.0
        %v1593 = vmax.f32 %v1555, 0.0
        %v1594 = vmax.f32 %v1560, 0.0
        %v1595 = vld [vmem:[#allocation5] sm:$0xff]
        %v1596 = vld [vmem:[#allocation5 + $0x8] sm:$0xff]
        %v1597 = vld [vmem:[#allocation5 + $0x10] sm:$0xff]
        %v1598 = vld [vmem:[#allocation5 + $0x18] sm:$0xff]
        %v1599 = vld [vmem:[%s8] sm:$0x1]
        %v1601 = vlaneseq
        %v1602 = vshrl.u32 %v1601, 7
        %v1603 = vsub.s32 0, %v1602
        %v1604 = vrot.slane %v1599, %v1603
        %vm1606 = vcmask 261120
        %v1608 = vsel %vm1606, %v1563, 0
        %v1611 = vsel %vm1606, %v1564, 0
        %v1614 = vsel %vm1606, %v1565, 0
        %v1617 = vsel %vm1606, %v1566, 0
        %v1620 = vsel %vm1606, %v1567, 0
        %v1623 = vsel %vm1606, %v1568, 0
        %v1626 = vsel %vm1606, %v1569, 0
        %v1629 = vsel %vm1606, %v1570, 0
        %v1632 = vsel %vm1606, %v1571, 0
        %v1635 = vsel %vm1606, %v1572, 0
        %v1638 = vsel %vm1606, %v1573, 0
        %v1641 = vsel %vm1606, %v1574, 0
        %v1644 = vsel %vm1606, %v1575, 0
        %v1647 = vsel %vm1606, %v1576, 0
        %v1650 = vsel %vm1606, %v1577, 0
        %v1653 = vsel %vm1606, %v1578, 0
        %v1656 = vsel %vm1606, %v1579, 0
        %v1659 = vsel %vm1606, %v1580, 0
        %v1662 = vsel %vm1606, %v1581, 0
        %v1665 = vsel %vm1606, %v1582, 0
        %v1668 = vsel %vm1606, %v1583, 0
        %v1671 = vsel %vm1606, %v1584, 0
        %v1674 = vsel %vm1606, %v1585, 0
        %v1677 = vsel %vm1606, %v1586, 0
        %v1680 = vsel %vm1606, %v1587, 0
        %v1683 = vsel %vm1606, %v1588, 0
        %v1686 = vsel %vm1606, %v1589, 0
        %v1689 = vsel %vm1606, %v1590, 0
        %v1692 = vsel %vm1606, %v1591, 0
        %v1695 = vsel %vm1606, %v1592, 0
        %v1698 = vsel %vm1606, %v1593, 0
        %v1701 = vsel %vm1606, %v1594, 0
        %1703 = vmatprep.subr.mxu0 0.0
        %1704 = vmatpush1.msra.mxu0 %v1595
        %1705 = vmatprep.subr.mxu0 0.0
        %1706 = vmatpush1.msra.mxu0 %v1596
        %1707 = vmatprep.subr.mxu0 0.0
        %1708 = vmatpush1.msra.mxu0 %v1597
        %1709 = vmatprep.subr.mxu0 0.0
        %1710 = vmatpush1.msra.mxu0 %v1598
        %1711 = vmatprep.subr.mxu0 0.0
        %1712 = vmatpush1.msra.mxu0 0.0
        %1713 = vmatprep.subr.mxu0 0.0
        %1714 = vmatpush1.msra.mxu0 0.0
        %1715 = vmatprep.subr.mxu0 0.0
        %1716 = vmatpush1.msra.mxu0 0.0
        %1717 = vmatprep.subr.mxu0 0.0
        %1718 = vmatpush1.msra.mxu0 0.0
        %1719 = vmatprep.subr.mxu0 0.0
        %1720 = vmatpush1.msra.mxu0 0.0
        %1721 = vmatprep.subr.mxu0 0.0
        %1722 = vmatpush1.msra.mxu0 0.0
        %1723 = vmatprep.subr.mxu0 0.0
        %1724 = vmatpush1.msra.mxu0 0.0
        %1725 = vmatprep.subr.mxu0 0.0
        %1726 = vmatpush1.msra.mxu0 0.0
        %1727 = vmatprep.subr.mxu0 0.0
        %1728 = vmatpush1.msra.mxu0 0.0
        %1729 = vmatprep.subr.mxu0 0.0
        %1730 = vmatpush1.msra.mxu0 0.0
        %1731 = vmatprep.subr.mxu0 0.0
        %1732 = vmatpush1.msra.mxu0 0.0
        %1733 = vmatprep.subr.mxu0 0.0
        %1734 = vmatpush1.msra.mxu0 0.0
        %1735 = vmatprep.subr.mxu0 0.0
        %1736 = vmatpush1.msra.mxu0 0.0
        %1737 = vmatprep.subr.mxu0 0.0
        %1738 = vmatpush1.msra.mxu0 0.0
        %1739 = vmatprep.subr.mxu0 0.0
        %1740 = vmatpush1.msra.mxu0 0.0
        %1741 = vmatprep.subr.mxu0 0.0
        %1742 = vmatpush1.msra.mxu0 0.0
        %1743 = vmatprep.subr.mxu0 0.0
        %1744 = vmatpush1.msra.mxu0 0.0
        %1745 = vmatprep.subr.mxu0 0.0
        %1746 = vmatpush1.msra.mxu0 0.0
        %1747 = vmatprep.subr.mxu0 0.0
        %1748 = vmatpush1.msra.mxu0 0.0
        %1749 = vmatprep.subr.mxu0 0.0
        %1750 = vmatpush1.msra.mxu0 0.0
        %1751 = vmatprep.subr.mxu0 0.0
        %1752 = vmatpush1.msra.mxu0 0.0
        %1753 = vmatprep.subr.mxu0 0.0
        %1754 = vmatpush1.msra.mxu0 0.0
        %1755 = vmatprep.subr.mxu0 0.0
        %1756 = vmatpush1.msra.mxu0 0.0
        %1757 = vmatprep.subr.mxu0 0.0
        %1758 = vmatpush1.msra.mxu0 0.0
        %1759 = vmatprep.subr.mxu0 0.0
        %1760 = vmatpush1.msra.mxu0 0.0
        %1761 = vmatprep.subr.mxu0 0.0
        %1762 = vmatpush1.msra.mxu0 0.0
        %1763 = vmatprep.subr.mxu0 0.0
        %1764 = vmatpush1.msra.mxu0 0.0
        %1765 = vmatprep.subr.mxu0 0.0
        %1766 = vmatpush1.msra.mxu0 0.0
        %1767 = vmatprep.mubr.f32.mxu0 0.0
        %1768 = vmatmul.mubr.f32.gmra.mrb[0].mxu0 %v1608
        %v1769 = vpop.f32.mrb[0].mxu0
        %v1770 = vadd.f32 %v1604, %v1769
        %v1771 = vpop.f32.mrb[0].mxu0
        %1772 = vmatprep.mubr.f32.mxu0 0.0
        %1773 = vmatmul.mubr.f32.gmra.mrb[0].mxu0 %v1611
        %v1774 = vpop.f32.mrb[0].mxu0
        %v1775 = vadd.f32 %v1604, %v1774
        %v1776 = vpop.f32.mrb[0].mxu0
        %1777 = vmatprep.mubr.f32.mxu0 0.0
        %1778 = vmatmul.mubr.f32.gmra.mrb[0].mxu0 %v1614
        %v1779 = vpop.f32.mrb[0].mxu0
        %v1780 = vadd.f32 %v1604, %v1779
        %v1781 = vpop.f32.mrb[0].mxu0
        %1782 = vmatprep.mubr.f32.mxu0 0.0
        %1783 = vmatmul.mubr.f32.gmra.mrb[0].mxu0 %v1617
        %v1784 = vpop.f32.mrb[0].mxu0
        %v1785 = vadd.f32 %v1604, %v1784
        %v1786 = vpop.f32.mrb[0].mxu0
        %1787 = vmatprep.mubr.f32.mxu0 0.0
        %1788 = vmatmul.mubr.f32.gmra.mrb[0].mxu0 %v1620
        %v1789 = vpop.f32.mrb[0].mxu0
        %v1790 = vadd.f32 %v1604, %v1789
        %v1791 = vpop.f32.mrb[0].mxu0
        %1792 = vmatprep.mubr.f32.mxu0 0.0
        %1793 = vmatmul.mubr.f32.gmra.mrb[0].mxu0 %v1623
        %v1794 = vpop.f32.mrb[0].mxu0
        %v1795 = vadd.f32 %v1604, %v1794
        %v1796 = vpop.f32.mrb[0].mxu0
        %1797 = vmatprep.mubr.f32.mxu0 0.0
        %1798 = vmatmul.mubr.f32.gmra.mrb[0].mxu0 %v1626
        %v1799 = vpop.f32.mrb[0].mxu0
        %v1800 = vadd.f32 %v1604, %v1799
        %v1801 = vpop.f32.mrb[0].mxu0
        %1802 = vmatprep.mubr.f32.mxu0 0.0
        %1803 = vmatmul.mubr.f32.gmra.mrb[0].mxu0 %v1629
        %v1804 = vpop.f32.mrb[0].mxu0
        %v1805 = vadd.f32 %v1604, %v1804
        %v1806 = vpop.f32.mrb[0].mxu0
        %1807 = vmatprep.mubr.f32.mxu0 0.0
        %1808 = vmatmul.mubr.f32.gmra.mrb[0].mxu0 %v1632
        %v1809 = vpop.f32.mrb[0].mxu0
        %v1810 = vadd.f32 %v1604, %v1809
        %v1811 = vpop.f32.mrb[0].mxu0
        %1812 = vmatprep.mubr.f32.mxu0 0.0
        %1813 = vmatmul.mubr.f32.gmra.mrb[0].mxu0 %v1635
        %v1814 = vpop.f32.mrb[0].mxu0
        %v1815 = vadd.f32 %v1604, %v1814
        %v1816 = vpop.f32.mrb[0].mxu0
        %1817 = vmatprep.mubr.f32.mxu0 0.0
        %1818 = vmatmul.mubr.f32.gmra.mrb[0].mxu0 %v1638
        %v1819 = vpop.f32.mrb[0].mxu0
        %v1820 = vadd.f32 %v1604, %v1819
        %v1821 = vpop.f32.mrb[0].mxu0
        %1822 = vmatprep.mubr.f32.mxu0 0.0
        %1823 = vmatmul.mubr.f32.gmra.mrb[0].mxu0 %v1641
        %v1824 = vpop.f32.mrb[0].mxu0
        %v1825 = vadd.f32 %v1604, %v1824
        %v1826 = vpop.f32.mrb[0].mxu0
        %1827 = vmatprep.mubr.f32.mxu0 0.0
        %1828 = vmatmul.mubr.f32.gmra.mrb[0].mxu0 %v1644
        %v1829 = vpop.f32.mrb[0].mxu0
        %v1830 = vadd.f32 %v1604, %v1829
        %v1831 = vpop.f32.mrb[0].mxu0
        %1832 = vmatprep.mubr.f32.mxu0 0.0
        %1833 = vmatmul.mubr.f32.gmra.mrb[0].mxu0 %v1647
        %v1834 = vpop.f32.mrb[0].mxu0
        %v1835 = vadd.f32 %v1604, %v1834
        %v1836 = vpop.f32.mrb[0].mxu0
        %1837 = vmatprep.mubr.f32.mxu0 0.0
        %1838 = vmatmul.mubr.f32.gmra.mrb[0].mxu0 %v1650
        %v1839 = vpop.f32.mrb[0].mxu0
        %v1840 = vadd.f32 %v1604, %v1839
        %v1841 = vpop.f32.mrb[0].mxu0
        %1842 = vmatprep.mubr.f32.mxu0 0.0
        %1843 = vmatmul.mubr.f32.gmra.mrb[0].mxu0 %v1653
        %v1844 = vpop.f32.mrb[0].mxu0
        %v1845 = vadd.f32 %v1604, %v1844
        %v1846 = vpop.f32.mrb[0].mxu0
        %1847 = vmatprep.mubr.f32.mxu0 0.0
        %1848 = vmatmul.mubr.f32.gmra.mrb[0].mxu0 %v1656
        %v1849 = vpop.f32.mrb[0].mxu0
        %v1850 = vadd.f32 %v1604, %v1849
        %v1851 = vpop.f32.mrb[0].mxu0
        %1852 = vmatprep.mubr.f32.mxu0 0.0
        %1853 = vmatmul.mubr.f32.gmra.mrb[0].mxu0 %v1659
        %v1854 = vpop.f32.mrb[0].mxu0
        %v1855 = vadd.f32 %v1604, %v1854
        %v1856 = vpop.f32.mrb[0].mxu0
        %1857 = vmatprep.mubr.f32.mxu0 0.0
        %1858 = vmatmul.mubr.f32.gmra.mrb[0].mxu0 %v1662
        %v1859 = vpop.f32.mrb[0].mxu0
        %v1860 = vadd.f32 %v1604, %v1859
        %v1861 = vpop.f32.mrb[0].mxu0
        %1862 = vmatprep.mubr.f32.mxu0 0.0
        %1863 = vmatmul.mubr.f32.gmra.mrb[0].mxu0 %v1665
        %v1864 = vpop.f32.mrb[0].mxu0
        %v1865 = vadd.f32 %v1604, %v1864
        %v1866 = vpop.f32.mrb[0].mxu0
        %1867 = vmatprep.mubr.f32.mxu0 0.0
        %1868 = vmatmul.mubr.f32.gmra.mrb[0].mxu0 %v1668
        %v1869 = vpop.f32.mrb[0].mxu0
        %v1870 = vadd.f32 %v1604, %v1869
        %v1871 = vpop.f32.mrb[0].mxu0
        %1872 = vmatprep.mubr.f32.mxu0 0.0
        %1873 = vmatmul.mubr.f32.gmra.mrb[0].mxu0 %v1671
        %v1874 = vpop.f32.mrb[0].mxu0
        %v1875 = vadd.f32 %v1604, %v1874
        %v1876 = vpop.f32.mrb[0].mxu0
        %1877 = vmatprep.mubr.f32.mxu0 0.0
        %1878 = vmatmul.mubr.f32.gmra.mrb[0].mxu0 %v1674
        %v1879 = vpop.f32.mrb[0].mxu0
        %v1880 = vadd.f32 %v1604, %v1879
        %v1881 = vpop.f32.mrb[0].mxu0
        %1882 = vmatprep.mubr.f32.mxu0 0.0
        %1883 = vmatmul.mubr.f32.gmra.mrb[0].mxu0 %v1677
        %v1884 = vpop.f32.mrb[0].mxu0
        %v1885 = vadd.f32 %v1604, %v1884
        %v1886 = vpop.f32.mrb[0].mxu0
        %1887 = vmatprep.mubr.f32.mxu0 0.0
        %1888 = vmatmul.mubr.f32.gmra.mrb[0].mxu0 %v1680
        %v1889 = vpop.f32.mrb[0].mxu0
        %v1890 = vadd.f32 %v1604, %v1889
        %v1891 = vpop.f32.mrb[0].mxu0
        %1892 = vmatprep.mubr.f32.mxu0 0.0
        %1893 = vmatmul.mubr.f32.gmra.mrb[0].mxu0 %v1683
        %v1894 = vpop.f32.mrb[0].mxu0
        %v1895 = vadd.f32 %v1604, %v1894
        %v1896 = vpop.f32.mrb[0].mxu0
        %1897 = vmatprep.mubr.f32.mxu0 0.0
        %1898 = vmatmul.mubr.f32.gmra.mrb[0].mxu0 %v1686
        %v1899 = vpop.f32.mrb[0].mxu0
        %v1900 = vadd.f32 %v1604, %v1899
        %v1901 = vpop.f32.mrb[0].mxu0
        %1902 = vmatprep.mubr.f32.mxu0 0.0
        %1903 = vmatmul.mubr.f32.gmra.mrb[0].mxu0 %v1689
        %v1904 = vpop.f32.mrb[0].mxu0
        %v1905 = vadd.f32 %v1604, %v1904
        %v1906 = vpop.f32.mrb[0].mxu0
        %1907 = vmatprep.mubr.f32.mxu0 0.0
        %1908 = vmatmul.mubr.f32.gmra.mrb[0].mxu0 %v1692
        %v1909 = vpop.f32.mrb[0].mxu0
        %v1910 = vadd.f32 %v1604, %v1909
        %v1911 = vpop.f32.mrb[0].mxu0
        %1912 = vmatprep.mubr.f32.mxu0 0.0
        %1913 = vmatmul.mubr.f32.gmra.mrb[0].mxu0 %v1695
        %v1914 = vpop.f32.mrb[0].mxu0
        %v1915 = vadd.f32 %v1604, %v1914
        %v1916 = vpop.f32.mrb[0].mxu0
        %1917 = vmatprep.mubr.f32.mxu0 0.0
        %1918 = vmatmul.mubr.f32.gmra.mrb[0].mxu0 %v1698
        %v1919 = vpop.f32.mrb[0].mxu0
        %v1920 = vadd.f32 %v1604, %v1919
        %v1921 = vpop.f32.mrb[0].mxu0
        %1922 = vmatprep.mubr.f32.mxu0 0.0
        %1923 = vmatmul.mubr.f32.gmra.mrb[0].mxu0 %v1701
        %v1924 = vpop.f32.mrb[0].mxu0
        %v1925 = vadd.f32 %v1604, %v1924
        %v1926 = vpop.f32.mrb[0].mxu0
        %1927 = vdwg.mxu0
        %v1928 = vmax.f32 %v1770, 0.0
        %v1929 = vmax.f32 %v1775, 0.0
        %v1930 = vmax.f32 %v1780, 0.0
        %v1931 = vmax.f32 %v1785, 0.0
        %v1932 = vmax.f32 %v1790, 0.0
        %v1933 = vmax.f32 %v1795, 0.0
        %v1934 = vmax.f32 %v1800, 0.0
        %v1935 = vmax.f32 %v1805, 0.0
        %v1936 = vmax.f32 %v1810, 0.0
        %v1937 = vmax.f32 %v1815, 0.0
        %v1938 = vmax.f32 %v1820, 0.0
        %v1939 = vmax.f32 %v1825, 0.0
        %v1940 = vmax.f32 %v1830, 0.0
        %v1941 = vmax.f32 %v1835, 0.0
        %v1942 = vmax.f32 %v1840, 0.0
        %v1943 = vmax.f32 %v1845, 0.0
        %v1944 = vmax.f32 %v1850, 0.0
        %v1945 = vmax.f32 %v1855, 0.0
        %v1946 = vmax.f32 %v1860, 0.0
        %v1947 = vmax.f32 %v1865, 0.0
        %v1948 = vmax.f32 %v1870, 0.0
        %v1949 = vmax.f32 %v1875, 0.0
        %v1950 = vmax.f32 %v1880, 0.0
        %v1951 = vmax.f32 %v1885, 0.0
        %v1952 = vmax.f32 %v1890, 0.0
        %v1953 = vmax.f32 %v1895, 0.0
        %v1954 = vmax.f32 %v1900, 0.0
        %v1955 = vmax.f32 %v1905, 0.0
        %v1956 = vmax.f32 %v1910, 0.0
        %v1957 = vmax.f32 %v1915, 0.0
        %v1958 = vmax.f32 %v1920, 0.0
        %v1959 = vmax.f32 %v1925, 0.0
        %v1960 = vld [vmem:[%s9] sm:$0x1]
        %v1962 = vlaneseq
        %v1963 = vshrl.u32 %v1962, 7
        %v1964 = vsub.s32 0, %v1963
        %v1965 = vrot.slane %v1960, %v1964
        %v1967 = vmul.f32 %v1928, %v1965
        %v1968 = vmul.f32 %v1929, %v1965
        %v1969 = vmul.f32 %v1930, %v1965
        %v1970 = vmul.f32 %v1931, %v1965
        %v1971 = vmul.f32 %v1932, %v1965
        %v1972 = vmul.f32 %v1933, %v1965
        %v1973 = vmul.f32 %v1934, %v1965
        %v1974 = vmul.f32 %v1935, %v1965
        %v1975 = vmul.f32 %v1936, %v1965
        %v1976 = vmul.f32 %v1937, %v1965
        %v1977 = vmul.f32 %v1938, %v1965
        %v1978 = vmul.f32 %v1939, %v1965
        %v1979 = vmul.f32 %v1940, %v1965
        %v1980 = vmul.f32 %v1941, %v1965
        %v1981 = vmul.f32 %v1942, %v1965
        %v1982 = vmul.f32 %v1943, %v1965
        %v1983 = vmul.f32 %v1944, %v1965
        %v1984 = vmul.f32 %v1945, %v1965
        %v1985 = vmul.f32 %v1946, %v1965
        %v1986 = vmul.f32 %v1947, %v1965
        %v1987 = vmul.f32 %v1948, %v1965
        %v1988 = vmul.f32 %v1949, %v1965
        %v1989 = vmul.f32 %v1950, %v1965
        %v1990 = vmul.f32 %v1951, %v1965
        %v1991 = vmul.f32 %v1952, %v1965
        %v1992 = vmul.f32 %v1953, %v1965
        %v1993 = vmul.f32 %v1954, %v1965
        %v1994 = vmul.f32 %v1955, %v1965
        %v1995 = vmul.f32 %v1956, %v1965
        %v1996 = vmul.f32 %v1957, %v1965
        %v1997 = vmul.f32 %v1958, %v1965
        %v1998 = vmul.f32 %v1959, %v1965
        %v1999 = vsel %vm1241, %v1967, 0.0
        %2000 = vadd.xlane.f32.xlu0 %v1999
        %v2001 = vpop.xlane.xlu0 %2000
        %v2002 = vsel %vm1241, %v1968, 0.0
        %2003 = vadd.xlane.f32.xlu0 %v2002
        %v2004 = vpop.xlane.xlu0 %2003
        %v2005 = vsel %vm1241, %v1969, 0.0
        %2006 = vadd.xlane.f32.xlu0 %v2005
        %v2007 = vpop.xlane.xlu0 %2006
        %v2008 = vsel %vm1241, %v1970, 0.0
        %2009 = vadd.xlane.f32.xlu0 %v2008
        %v2010 = vpop.xlane.xlu0 %2009
        %v2011 = vsel %vm1241, %v1971, 0.0
        %2012 = vadd.xlane.f32.xlu0 %v2011
        %v2013 = vpop.xlane.xlu0 %2012
        %v2014 = vsel %vm1241, %v1972, 0.0
        %2015 = vadd.xlane.f32.xlu0 %v2014
        %v2016 = vpop.xlane.xlu0 %2015
        %v2017 = vsel %vm1241, %v1973, 0.0
        %2018 = vadd.xlane.f32.xlu0 %v2017
        %v2019 = vpop.xlane.xlu0 %2018
        %v2020 = vsel %vm1241, %v1974, 0.0
        %2021 = vadd.xlane.f32.xlu0 %v2020
        %v2022 = vpop.xlane.xlu0 %2021
        %v2023 = vsel %vm1241, %v1975, 0.0
        %2024 = vadd.xlane.f32.xlu0 %v2023
        %v2025 = vpop.xlane.xlu0 %2024
        %v2026 = vsel %vm1241, %v1976, 0.0
        %2027 = vadd.xlane.f32.xlu0 %v2026
        %v2028 = vpop.xlane.xlu0 %2027
        %v2029 = vsel %vm1241, %v1977, 0.0
        %2030 = vadd.xlane.f32.xlu0 %v2029
        %v2031 = vpop.xlane.xlu0 %2030
        %v2032 = vsel %vm1241, %v1978, 0.0
        %2033 = vadd.xlane.f32.xlu0 %v2032
        %v2034 = vpop.xlane.xlu0 %2033
        %v2035 = vsel %vm1241, %v1979, 0.0
        %2036 = vadd.xlane.f32.xlu0 %v2035
        %v2037 = vpop.xlane.xlu0 %2036
        %v2038 = vsel %vm1241, %v1980, 0.0
        %2039 = vadd.xlane.f32.xlu0 %v2038
        %v2040 = vpop.xlane.xlu0 %2039
        %v2041 = vsel %vm1241, %v1981, 0.0
        %2042 = vadd.xlane.f32.xlu0 %v2041
        %v2043 = vpop.xlane.xlu0 %2042
        %v2044 = vsel %vm1241, %v1982, 0.0
        %2045 = vadd.xlane.f32.xlu0 %v2044
        %v2046 = vpop.xlane.xlu0 %2045
        %v2047 = vsel %vm1241, %v1983, 0.0
        %2048 = vadd.xlane.f32.xlu0 %v2047
        %v2049 = vpop.xlane.xlu0 %2048
        %v2050 = vsel %vm1241, %v1984, 0.0
        %2051 = vadd.xlane.f32.xlu0 %v2050
        %v2052 = vpop.xlane.xlu0 %2051
        %v2053 = vsel %vm1241, %v1985, 0.0
        %2054 = vadd.xlane.f32.xlu0 %v2053
        %v2055 = vpop.xlane.xlu0 %2054
        %v2056 = vsel %vm1241, %v1986, 0.0
        %2057 = vadd.xlane.f32.xlu0 %v2056
        %v2058 = vpop.xlane.xlu0 %2057
        %v2059 = vsel %vm1241, %v1987, 0.0
        %2060 = vadd.xlane.f32.xlu0 %v2059
        %v2061 = vpop.xlane.xlu0 %2060
        %v2062 = vsel %vm1241, %v1988, 0.0
        %2063 = vadd.xlane.f32.xlu0 %v2062
        %v2064 = vpop.xlane.xlu0 %2063
        %v2065 = vsel %vm1241, %v1989, 0.0
        %2066 = vadd.xlane.f32.xlu0 %v2065
        %v2067 = vpop.xlane.xlu0 %2066
        %v2068 = vsel %vm1241, %v1990, 0.0
        %2069 = vadd.xlane.f32.xlu0 %v2068
        %v2070 = vpop.xlane.xlu0 %2069
        %v2071 = vsel %vm1241, %v1991, 0.0
        %2072 = vadd.xlane.f32.xlu0 %v2071
        %v2073 = vpop.xlane.xlu0 %2072
        %v2074 = vsel %vm1241, %v1992, 0.0
        %2075 = vadd.xlane.f32.xlu0 %v2074
        %v2076 = vpop.xlane.xlu0 %2075
        %v2077 = vsel %vm1241, %v1993, 0.0
        %2078 = vadd.xlane.f32.xlu0 %v2077
        %v2079 = vpop.xlane.xlu0 %2078
        %v2080 = vsel %vm1241, %v1994, 0.0
        %2081 = vadd.xlane.f32.xlu0 %v2080
        %v2082 = vpop.xlane.xlu0 %2081
        %v2083 = vsel %vm1241, %v1995, 0.0
        %2084 = vadd.xlane.f32.xlu0 %v2083
        %v2085 = vpop.xlane.xlu0 %2084
        %v2086 = vsel %vm1241, %v1996, 0.0
        %2087 = vadd.xlane.f32.xlu0 %v2086
        %v2088 = vpop.xlane.xlu0 %2087
        %v2089 = vsel %vm1241, %v1997, 0.0
        %2090 = vadd.xlane.f32.xlu0 %v2089
        %v2091 = vpop.xlane.xlu0 %2090
        %v2092 = vsel %vm1241, %v1998, 0.0
        %2093 = vadd.xlane.f32.xlu0 %v2092
        %v2094 = vpop.xlane.xlu0 %2093
        %v2095 = vld [vmem:[#allocation2] sm:$0x1]
        %v2097 = vlaneseq
        %v2098 = vshrl.u32 %v2097, 7
        %v2099 = vsub.s32 0, %v2098
        %v2100 = vrot.slane %v2095, %v2099
        %v2102 = vadd.f32 %v2001, %v2100
        %v2103 = vadd.f32 %v2004, %v2100
        %v2104 = vadd.f32 %v2007, %v2100
        %v2105 = vadd.f32 %v2010, %v2100
        %v2106 = vadd.f32 %v2013, %v2100
        %v2107 = vadd.f32 %v2016, %v2100
        %v2108 = vadd.f32 %v2019, %v2100
        %v2109 = vadd.f32 %v2022, %v2100
        %v2110 = vadd.f32 %v2025, %v2100
        %v2111 = vadd.f32 %v2028, %v2100
        %v2112 = vadd.f32 %v2031, %v2100
        %v2113 = vadd.f32 %v2034, %v2100
        %v2114 = vadd.f32 %v2037, %v2100
        %v2115 = vadd.f32 %v2040, %v2100
        %v2116 = vadd.f32 %v2043, %v2100
        %v2117 = vadd.f32 %v2046, %v2100
        %v2118 = vadd.f32 %v2049, %v2100
        %v2119 = vadd.f32 %v2052, %v2100
        %v2120 = vadd.f32 %v2055, %v2100
        %v2121 = vadd.f32 %v2058, %v2100
        %v2122 = vadd.f32 %v2061, %v2100
        %v2123 = vadd.f32 %v2064, %v2100
        %v2124 = vadd.f32 %v2067, %v2100
        %v2125 = vadd.f32 %v2070, %v2100
        %v2126 = vadd.f32 %v2073, %v2100
        %v2127 = vadd.f32 %v2076, %v2100
        %v2128 = vadd.f32 %v2079, %v2100
        %v2129 = vadd.f32 %v2082, %v2100
        %v2130 = vadd.f32 %v2085, %v2100
        %v2131 = vadd.f32 %v2088, %v2100
        %v2132 = vadd.f32 %v2091, %v2100
        %v2133 = vadd.f32 %v2094, %v2100
        %v2134 = vxor.u32 %v2102, 2147483648
        %v2135 = vxor.u32 %v2103, 2147483648
        %v2136 = vxor.u32 %v2104, 2147483648
        %v2137 = vxor.u32 %v2105, 2147483648
        %v2138 = vxor.u32 %v2106, 2147483648
        %v2139 = vxor.u32 %v2107, 2147483648
        %v2140 = vxor.u32 %v2108, 2147483648
        %v2141 = vxor.u32 %v2109, 2147483648
        %v2142 = vxor.u32 %v2110, 2147483648
        %v2143 = vxor.u32 %v2111, 2147483648
        %v2144 = vxor.u32 %v2112, 2147483648
        %v2145 = vxor.u32 %v2113, 2147483648
        %v2146 = vxor.u32 %v2114, 2147483648
        %v2147 = vxor.u32 %v2115, 2147483648
        %v2148 = vxor.u32 %v2116, 2147483648
        %v2149 = vxor.u32 %v2117, 2147483648
        %v2150 = vxor.u32 %v2118, 2147483648
        %v2151 = vxor.u32 %v2119, 2147483648
        %v2152 = vxor.u32 %v2120, 2147483648
        %v2153 = vxor.u32 %v2121, 2147483648
        %v2154 = vxor.u32 %v2122, 2147483648
        %v2155 = vxor.u32 %v2123, 2147483648
        %v2156 = vxor.u32 %v2124, 2147483648
        %v2157 = vxor.u32 %v2125, 2147483648
        %v2158 = vxor.u32 %v2126, 2147483648
        %v2159 = vxor.u32 %v2127, 2147483648
        %v2160 = vxor.u32 %v2128, 2147483648
        %v2161 = vxor.u32 %v2129, 2147483648
        %v2162 = vxor.u32 %v2130, 2147483648
        %v2163 = vxor.u32 %v2131, 2147483648
        %v2164 = vxor.u32 %v2132, 2147483648
        %v2165 = vxor.u32 %v2133, 2147483648
        %v2166 = vmul.f32 %v2134, 1.442695
        %v2167 = vpow.pop %v2166
        %v2168 = vmul.f32 %v2135, 1.442695
        %v2169 = vpow.pop %v2168
        %v2170 = vmul.f32 %v2136, 1.442695
        %v2171 = vpow.pop %v2170
        %v2172 = vmul.f32 %v2137, 1.442695
        %v2173 = vpow.pop %v2172
        %v2174 = vmul.f32 %v2138, 1.442695
        %v2175 = vpow.pop %v2174
        %v2176 = vmul.f32 %v2139, 1.442695
        %v2177 = vpow.pop %v2176
        %v2178 = vmul.f32 %v2140, 1.442695
        %v2179 = vpow.pop %v2178
        %v2180 = vmul.f32 %v2141, 1.442695
        %v2181 = vpow.pop %v2180
        %v2182 = vmul.f32 %v2142, 1.442695
        %v2183 = vpow.pop %v2182
        %v2184 = vmul.f32 %v2143, 1.442695
        %v2185 = vpow.pop %v2184
        %v2186 = vmul.f32 %v2144, 1.442695
        %v2187 = vpow.pop %v2186
        %v2188 = vmul.f32 %v2145, 1.442695
        %v2189 = vpow.pop %v2188
        %v2190 = vmul.f32 %v2146, 1.442695
        %v2191 = vpow.pop %v2190
        %v2192 = vmul.f32 %v2147, 1.442695
        %v2193 = vpow.pop %v2192
        %v2194 = vmul.f32 %v2148, 1.442695
        %v2195 = vpow.pop %v2194
        %v2196 = vmul.f32 %v2149, 1.442695
        %v2197 = vpow.pop %v2196
        %v2198 = vmul.f32 %v2150, 1.442695
        %v2199 = vpow.pop %v2198
        %v2200 = vmul.f32 %v2151, 1.442695
        %v2201 = vpow.pop %v2200
        %v2202 = vmul.f32 %v2152, 1.442695
        %v2203 = vpow.pop %v2202
        %v2204 = vmul.f32 %v2153, 1.442695
        %v2205 = vpow.pop %v2204
        %v2206 = vmul.f32 %v2154, 1.442695
        %v2207 = vpow.pop %v2206
        %v2208 = vmul.f32 %v2155, 1.442695
        %v2209 = vpow.pop %v2208
        %v2210 = vmul.f32 %v2156, 1.442695
        %v2211 = vpow.pop %v2210
        %v2212 = vmul.f32 %v2157, 1.442695
        %v2213 = vpow.pop %v2212
        %v2214 = vmul.f32 %v2158, 1.442695
        %v2215 = vpow.pop %v2214
        %v2216 = vmul.f32 %v2159, 1.442695
        %v2217 = vpow.pop %v2216
        %v2218 = vmul.f32 %v2160, 1.442695
        %v2219 = vpow.pop %v2218
        %v2220 = vmul.f32 %v2161, 1.442695
        %v2221 = vpow.pop %v2220
        %v2222 = vmul.f32 %v2162, 1.442695
        %v2223 = vpow.pop %v2222
        %v2224 = vmul.f32 %v2163, 1.442695
        %v2225 = vpow.pop %v2224
        %v2226 = vmul.f32 %v2164, 1.442695
        %v2227 = vpow.pop %v2226
        %v2228 = vmul.f32 %v2165, 1.442695
        %v2229 = vpow.pop %v2228
        %v2230 = vadd.f32 %v2167, 1.0
        %v2231 = vadd.f32 %v2169, 1.0
        %v2232 = vadd.f32 %v2171, 1.0
        %v2233 = vadd.f32 %v2173, 1.0
        %v2234 = vadd.f32 %v2175, 1.0
        %v2235 = vadd.f32 %v2177, 1.0
        %v2236 = vadd.f32 %v2179, 1.0
        %v2237 = vadd.f32 %v2181, 1.0
        %v2238 = vadd.f32 %v2183, 1.0
        %v2239 = vadd.f32 %v2185, 1.0
        %v2240 = vadd.f32 %v2187, 1.0
        %v2241 = vadd.f32 %v2189, 1.0
        %v2242 = vadd.f32 %v2191, 1.0
        %v2243 = vadd.f32 %v2193, 1.0
        %v2244 = vadd.f32 %v2195, 1.0
        %v2245 = vadd.f32 %v2197, 1.0
        %v2246 = vadd.f32 %v2199, 1.0
        %v2247 = vadd.f32 %v2201, 1.0
        %v2248 = vadd.f32 %v2203, 1.0
        %v2249 = vadd.f32 %v2205, 1.0
        %v2250 = vadd.f32 %v2207, 1.0
        %v2251 = vadd.f32 %v2209, 1.0
        %v2252 = vadd.f32 %v2211, 1.0
        %v2253 = vadd.f32 %v2213, 1.0
        %v2254 = vadd.f32 %v2215, 1.0
        %v2255 = vadd.f32 %v2217, 1.0
        %v2256 = vadd.f32 %v2219, 1.0
        %v2257 = vadd.f32 %v2221, 1.0
        %v2258 = vadd.f32 %v2223, 1.0
        %v2259 = vadd.f32 %v2225, 1.0
        %v2260 = vadd.f32 %v2227, 1.0
        %v2261 = vadd.f32 %v2229, 1.0
        %v2262 = vrcp.pop %v2230
        %v2263 = vmul.f32 1.0, %v2262
        %v2264 = vrcp.pop %v2231
        %v2265 = vmul.f32 1.0, %v2264
        %v2266 = vrcp.pop %v2232
        %v2267 = vmul.f32 1.0, %v2266
        %v2268 = vrcp.pop %v2233
        %v2269 = vmul.f32 1.0, %v2268
        %v2270 = vrcp.pop %v2234
        %v2271 = vmul.f32 1.0, %v2270
        %v2272 = vrcp.pop %v2235
        %v2273 = vmul.f32 1.0, %v2272
        %v2274 = vrcp.pop %v2236
        %v2275 = vmul.f32 1.0, %v2274
        %v2276 = vrcp.pop %v2237
        %v2277 = vmul.f32 1.0, %v2276
        %v2278 = vrcp.pop %v2238
        %v2279 = vmul.f32 1.0, %v2278
        %v2280 = vrcp.pop %v2239
        %v2281 = vmul.f32 1.0, %v2280
        %v2282 = vrcp.pop %v2240
        %v2283 = vmul.f32 1.0, %v2282
        %v2284 = vrcp.pop %v2241
        %v2285 = vmul.f32 1.0, %v2284
        %v2286 = vrcp.pop %v2242
        %v2287 = vmul.f32 1.0, %v2286
        %v2288 = vrcp.pop %v2243
        %v2289 = vmul.f32 1.0, %v2288
        %v2290 = vrcp.pop %v2244
        %v2291 = vmul.f32 1.0, %v2290
        %v2292 = vrcp.pop %v2245
        %v2293 = vmul.f32 1.0, %v2292
        %v2294 = vrcp.pop %v2246
        %v2295 = vmul.f32 1.0, %v2294
        %v2296 = vrcp.pop %v2247
        %v2297 = vmul.f32 1.0, %v2296
        %v2298 = vrcp.pop %v2248
        %v2299 = vmul.f32 1.0, %v2298
        %v2300 = vrcp.pop %v2249
        %v2301 = vmul.f32 1.0, %v2300
        %v2302 = vrcp.pop %v2250
        %v2303 = vmul.f32 1.0, %v2302
        %v2304 = vrcp.pop %v2251
        %v2305 = vmul.f32 1.0, %v2304
        %v2306 = vrcp.pop %v2252
        %v2307 = vmul.f32 1.0, %v2306
        %v2308 = vrcp.pop %v2253
        %v2309 = vmul.f32 1.0, %v2308
        %v2310 = vrcp.pop %v2254
        %v2311 = vmul.f32 1.0, %v2310
        %v2312 = vrcp.pop %v2255
        %v2313 = vmul.f32 1.0, %v2312
        %v2314 = vrcp.pop %v2256
        %v2315 = vmul.f32 1.0, %v2314
        %v2316 = vrcp.pop %v2257
        %v2317 = vmul.f32 1.0, %v2316
        %v2318 = vrcp.pop %v2258
        %v2319 = vmul.f32 1.0, %v2318
        %v2320 = vrcp.pop %v2259
        %v2321 = vmul.f32 1.0, %v2320
        %v2322 = vrcp.pop %v2260
        %v2323 = vmul.f32 1.0, %v2322
        %v2324 = vrcp.pop %v2261
        %v2325 = vmul.f32 1.0, %v2324
        %vm2326 = vcmask 7168
        %2327 = vst.msk [vmem:[%s446] sm:$0xff] %vm2326, %v2263
        %2328 = vst.msk [vmem:[%s446 + $0x8] sm:$0xff] %vm2326, %v2265
        %2329 = vst.msk [vmem:[%s446 + $0x10] sm:$0xff] %vm2326, %v2267
        %2330 = vst.msk [vmem:[%s446 + $0x18] sm:$0xff] %vm2326, %v2269
        %2331 = vst.msk [vmem:[%s446 + $0x20] sm:$0xff] %vm2326, %v2271
        %2332 = vst.msk [vmem:[%s446 + $0x28] sm:$0xff] %vm2326, %v2273
        %2333 = vst.msk [vmem:[%s446 + $0x30] sm:$0xff] %vm2326, %v2275
        %2334 = vst.msk [vmem:[%s446 + $0x38] sm:$0xff] %vm2326, %v2277
        %2335 = vst.msk [vmem:[%s446 + $0x40] sm:$0xff] %vm2326, %v2279
        %2336 = vst.msk [vmem:[%s446 + $0x48] sm:$0xff] %vm2326, %v2281
        %2337 = vst.msk [vmem:[%s446 + $0x50] sm:$0xff] %vm2326, %v2283
        %2338 = vst.msk [vmem:[%s446 + $0x58] sm:$0xff] %vm2326, %v2285
        %2339 = vst.msk [vmem:[%s446 + $0x60] sm:$0xff] %vm2326, %v2287
        %2340 = vst.msk [vmem:[%s446 + $0x68] sm:$0xff] %vm2326, %v2289
        %2341 = vst.msk [vmem:[%s446 + $0x70] sm:$0xff] %vm2326, %v2291
        %2342 = vst.msk [vmem:[%s446 + $0x78] sm:$0xff] %vm2326, %v2293
        %2343 = vst.msk [vmem:[%s446 + $0x80] sm:$0xff] %vm2326, %v2295
        %2344 = vst.msk [vmem:[%s446 + $0x88] sm:$0xff] %vm2326, %v2297
        %2345 = vst.msk [vmem:[%s446 + $0x90] sm:$0xff] %vm2326, %v2299
        %2346 = vst.msk [vmem:[%s446 + $0x98] sm:$0xff] %vm2326, %v2301
        %2347 = vst.msk [vmem:[%s446 + $0xa0] sm:$0xff] %vm2326, %v2303
        %2348 = vst.msk [vmem:[%s446 + $0xa8] sm:$0xff] %vm2326, %v2305
        %2349 = vst.msk [vmem:[%s446 + $0xb0] sm:$0xff] %vm2326, %v2307
        %2350 = vst.msk [vmem:[%s446 + $0xb8] sm:$0xff] %vm2326, %v2309
        %2351 = vst.msk [vmem:[%s446 + $0xc0] sm:$0xff] %vm2326, %v2311
        %2352 = vst.msk [vmem:[%s446 + $0xc8] sm:$0xff] %vm2326, %v2313
        %2353 = vst.msk [vmem:[%s446 + $0xd0] sm:$0xff] %vm2326, %v2315
        %2354 = vst.msk [vmem:[%s446 + $0xd8] sm:$0xff] %vm2326, %v2317
        %2355 = vst.msk [vmem:[%s446 + $0xe0] sm:$0xff] %vm2326, %v2319
        %2356 = vst.msk [vmem:[%s446 + $0xe8] sm:$0xff] %vm2326, %v2321
        %2357 = vst.msk [vmem:[%s446 + $0xf0] sm:$0xff] %vm2326, %v2323
        %2358 = vst.msk [vmem:[%s446 + $0xf8] sm:$0xff] %vm2326, %v2325
        %s2359 = smul.u32 32, %s28
        %p2360 = scmp.lt.s32.totalorder %s2359, 63
        %s2361 = scalar_select %p2360, %s2359, 63
        %s2362 = smul.addr %s2361, 8
        %s2363 = scalar_lea.vmem %s11, %s2362
        // Predicated region
        $region73: #{tpu_custom_call.1} parent=63 // pred_check
          %p2364 = pneg %p287
        $region74: #{tpu_custom_call.1} parent=63 // pred_check_branch
          %2366 = sbr.rel (%p2364) target = $region76
        $region75: #{tpu_custom_call.1} parent=63 // pred_region
          %s2367 = smul.u32 32, %s28
        $region76: #{tpu_custom_call.1} parent=63 // pred_fallthru
          _
      $region64: #{tpu_custom_call.1} parent=5 // pred_fallthru
        _
      %p2368 = scmp.le.s32.totalorder 2, %s23
      // Predicated region
      $region77: #{tpu_custom_call.1} parent=5 // pred_check
        %p2369 = pneg %p2368
      $region78: #{tpu_custom_call.1} parent=5 // pred_check_branch
        %2371 = sbr.rel (%p2369) target = $region80
      $region79: #{tpu_custom_call.1} parent=5 // pred_region
        %s2372 = ssub.s32 %s23, 2
        // Predicated region
        $region81: #{tpu_custom_call.1} parent=79 // pred_check
          %p2373 = pneg %p293
        $region82: #{tpu_custom_call.1} parent=79 // pred_check_branch
          %2375 = sbr.rel (%p2373) target = $region84
        $region83: #{tpu_custom_call.1} parent=79 // pred_region
          %s2376 = smul.u32 32, %s29
          %p2377 = scmp.lt.s32.totalorder %s2376, 63
          %s2378 = scalar_select %p2377, %s2376, 63
          %s2379 = smul.addr %s2378, 8
          %s2380 = scalar_lea.vmem %s11, %s2379
        $region84: #{tpu_custom_call.1} parent=79 // pred_fallthru
          _
      $region80: #{tpu_custom_call.1} parent=5 // pred_fallthru
        _
    $region6: #{tpu_custom_call.1} parent=1 // loop_footer
      %s27 = sadd.s32 1, %s23
    $region7: #{tpu_custom_call.1} parent=1 // loop_footer_branch
      %22 = sbr.rel target = $region3
    $region8: #{tpu_custom_call.1} parent=1 // loop_exit
      _
    %2381 = vsyncpa [#allocation4], 1
    %s2382 = scalar_lea.sflag [#allocation4], 1
    %2383 = vsyncpa %s2382, 1
    %2384 = vsyncpa [#allocation6], 1

</llo_original>
